<compile_context>
chip_gen: v7x
topology: tpu7x:2x2x1
jax: 0.10.0
libtpu: 0.0.40
codegen_flags: <defaults>
</compile_context>

<pallas_src>
import functools
import math

import jax
import jax.numpy as jnp
from jax.experimental import pallas as pl
from jax.experimental.pallas import tpu as pltpu

_LANE = 128       # TPU lane width
_SUBLANE = 8      # TPU sublane count
_RPAD = _LANE     # rationale logits padded to this many output columns
_NEG_INF = -1e9   # additive mask for padded key columns


def _round_up(x, m):
    return ((x + m - 1) // m) * m


def _vmem_capacity_bytes():
    """Per-TensorCore VMEM capacity; conservative v7x fallback if unavailable."""
    try:
        cap = int(getattr(pltpu.get_tpu_info(), "vmem_capacity_bytes", 0))
        if cap > 0:
            return cap
    except Exception:
        pass
    return 64 * 1024 * 1024


def _pick_batch_tile(B, S_r, S_s, H, budget_bytes):
    """Pick the batch tile from the VMEM budget (intermediates scale ~linearly
    with Bt), preferring Bt*S_r >= 512 rows (MXU-wide M) and, when shapes
    allow, >= 4 grid steps for DMA/compute overlap + megacore balance."""
    divisors = [d for d in range(1, B + 1) if B % d == 0]

    def est(bt):
        # dominant f32 temporaries: q, kv, scores, p, attn, seq, rat
        f32_tmp = 4 * bt * (S_r * H + S_s * 2 * H + 2 * S_r * S_s
                            + 2 * S_r * H + S_r * _RPAD)
        # bf16 copies of q/k/v/p
        bf16_tmp = 2 * bt * (S_r * H + 2 * S_s * H + S_r * S_s)
        # double-buffered bf16 activation blocks + f32 output blocks
        act_io = 2 * (2 * bt * (S_r + S_s) * H + 4 * bt * (H + S_r * _RPAD))
        return f32_tmp + bf16_tmp + act_io

    fitting = [d for d in divisors if est(d) <= budget_bytes] or [1]
    wide = [d for d in fitting if d * S_r >= 512]          # MXU-wide M
    if wide:
        deep = [d for d in wide if B // d >= 4]             # pipelined grid
        return min(deep) if deep else min(wide)
    deep = [d for d in fitting if B // d >= 4]
    return max(deep) if deep else max(fitting)


def _bi_encoder_head_kernel(
    rp_ref, sp_ref,                     # activations (bf16)
    wq_ref, bq_ref,                     # Q projection (1/sqrt(d_k) pre-folded)
    wkv_ref, bkv_ref,                   # fused K|V projection
    wo_ref, bo_ref,                     # attention output projection
    wr_ref, br_ref,                     # rationale classifier (padded to 128 cols)
    cls_ref, rat_ref,                   # outputs (f32, lane-dense last dim)
    *, s_s_valid,                       # static: number of real seeker tokens
):
    Bt, S_r, H = rp_ref.shape
    _, S_s, _ = sp_ref.shape
    f32, bf16 = jnp.float32, jnp.bfloat16

    rp = rp_ref[...]                            # (Bt, S_r, H) bf16
    sp = sp_ref[...]                            # (Bt, S_s, H) bf16
    rp2 = rp.reshape(Bt * S_r, H)               # flatten batch*seq -> wide MXU M
    sp2 = sp.reshape(Bt * S_s, H)

    # ---- projections: bf16 operands, f32 accumulation -----------------------
    q = jnp.dot(rp2, wq_ref[...], preferred_element_type=f32) + bq_ref[...]
    kv = jnp.dot(sp2, wkv_ref[...], preferred_element_type=f32) + bkv_ref[...]
    kvb = kv.astype(bf16)                       # one wide cast; halves live bytes
    qb = q.reshape(Bt, S_r, H).astype(bf16)
    kb = kvb[:, :H].reshape(Bt, S_s, H)
    vb = kvb[:, H:].reshape(Bt, S_s, H)

    # ---- single-head attention, softmax over keys (f32 math) ----------------
    # contract the last dim of both operands: no materialized k transpose.
    scores = jnp.einsum("brh,bsh->brs", qb, kb, preferred_element_type=f32)
    if s_s_valid < S_s:                         # static: mask padded key columns
        key_col = jax.lax.broadcasted_iota(jnp.int32, (1, 1, S_s), 2)
        scores = jnp.where(key_col < s_s_valid, scores, jnp.float32(_NEG_INF))
    scores = scores - jnp.max(scores, axis=-1, keepdims=True)
    p = jnp.exp(scores)
    p = p * pl.reciprocal(jnp.sum(p, axis=-1, keepdims=True), approx=True)

    attn = jnp.einsum("brs,bsh->brh", p.astype(bf16), vb,
                      preferred_element_type=f32)
    attn = attn.reshape(Bt * S_r, H).astype(bf16)
    attn = jnp.dot(attn, wo_ref[...], preferred_element_type=f32) + bo_ref[...]

    # residual add in f32 (dropout == identity in eval)
    seq = rp2.astype(f32) + attn                                  # (Bt*S_r, H)

    # ---- per-token rationale logits (lane-dense padded columns) -------------
    rat = jnp.dot(seq.astype(bf16), wr_ref[...],
                  preferred_element_type=f32) + br_ref[...]
    rat_ref[...] = rat.reshape(Bt, S_r, _RPAD)

    # ---- packed CLS rows (empathy head runs in the wrapper) -----------------
    cls_ref[0] = seq.reshape(Bt, S_r, H)[:, 0, :]                 # (Bt, H)


def bi_encoder_forward(seq_rp, seq_sp, params, *, batch_tile=None):
    """seq_rp: (B, S_r, H) responder encoder output; seq_sp: (B, S_s, H) seeker output."""
    B, S_r, H = seq_rp.shape
    Bs, S_s, Hs = seq_sp.shape
    assert Bs == B and Hs == H
    assert H % _LANE == 0, "hidden size must be a multiple of 128 (lane width)"
    R = params["w_rat"].shape[-1]
    assert R <= _RPAD

    f32, bf16 = jnp.float32, jnp.bfloat16
    scale = 1.0 / math.sqrt(H)          # d_k == hidden_size since attn_heads == 1

    # --- sequence padding: queries to a sublane multiple, keys to MXU width --
    S_rp = _round_up(S_r, _SUBLANE)
    S_sp = _round_up(S_s, _LANE)
    if S_rp != S_r:
        seq_rp = jnp.pad(seq_rp, ((0, 0), (0, S_rp - S_r), (0, 0)))
    if S_sp != S_s:
        seq_sp = jnp.pad(seq_sp, ((0, 0), (0, S_sp - S_s), (0, 0)))

    # --- weight prep in the wrapper (once): scale fold, KV fusion, padding ---
    wq = (params["wq"] * scale).astype(bf16)
    bq = (params["bq"] * scale).astype(f32)
    wkv = jnp.concatenate([params["wk"], params["wv"]], axis=1).astype(bf16)
    bkv = jnp.concatenate([params["bk"], params["bv"]], axis=1).astype(f32)
    wo = params["wo"].astype(bf16)
    bo = params["bo"].astype(f32)
    wr = jnp.pad(params["w_rat"], ((0, 0), (0, _RPAD - R))).astype(bf16)
    br = jnp.pad(params["b_rat"], ((0, 0), (0, _RPAD - R))).astype(f32)
    weight_args = [wq, bq, wkv, bkv, wo, bo, wr, br]
    weight_bytes = sum(int(w.size) * w.dtype.itemsize for w in weight_args)

    # --- VMEM budgeting: ~18% headroom under the per-TC capacity -------------
    vmem_cap = _vmem_capacity_bytes()
    vmem_limit = max(int(0.82 * vmem_cap), 32 * 1024 * 1024)
    # single-buffer the block-invariant weights once they are big enough to
    # matter (production H=768 -> ~4.7 MiB bf16 set would otherwise be
    # double-buffered to ~9.4 MiB per TensorCore).
    single_buffer_weights = weight_bytes >= 2 * 1024 * 1024
    weight_resident = weight_bytes * (1 if single_buffer_weights else 2)
    tile_budget = max(vmem_limit // 2 - weight_resident, 1 * 1024 * 1024)

    if batch_tile is None:
        batch_tile = _pick_batch_tile(B, S_rp, S_sp, H, tile_budget)
    assert B % batch_tile == 0
    n_steps = B // batch_tile

    weight_mode = pl.Buffered(1) if single_buffer_weights else None

    def const_spec(shape):
        nd = len(shape)
        idx = lambda b, _nd=nd: (0,) * _nd
        if weight_mode is not None:
            return pl.BlockSpec(shape, idx, pipeline_mode=weight_mode)
        return pl.BlockSpec(shape, idx)

    in_specs = [
        pl.BlockSpec((batch_tile, S_rp, H), lambda b: (b, 0, 0)),    # responder acts
        pl.BlockSpec((batch_tile, S_sp, H), lambda b: (b, 0, 0)),    # seeker acts
    ] + [const_spec(w.shape) for w in weight_args]

    out_specs = [
        pl.BlockSpec((1, batch_tile, H), lambda b: (b, 0, 0)),           # packed CLS rows
        pl.BlockSpec((batch_tile, S_rp, _RPAD), lambda b: (b, 0, 0)),    # rationale logits
    ]
    out_shape = [
        jax.ShapeDtypeStruct((n_steps, batch_tile, H), f32),
        jax.ShapeDtypeStruct((B, S_rp, _RPAD), f32),
    ]

    flops = 2 * B * (
        S_rp * H * H              # q projection
        + S_sp * H * 2 * H        # fused k/v projection
        + 2 * S_rp * S_sp * H     # scores + p @ v
        + S_rp * H * H            # attention output projection
        + S_rp * H * _RPAD        # rationale classifier
    )
    bytes_accessed = (
        2 * B * (S_rp + S_sp) * H          # bf16 activations in
        + weight_bytes                      # block-invariant weights, DMA'd once
        + 4 * (B * H + B * S_rp * _RPAD)    # f32 outputs
    )
    cost = pl.CostEstimate(
        flops=flops,
        transcendentals=B * S_rp * (S_sp + 1),
        bytes_accessed=bytes_accessed,
    )

    kernel = functools.partial(_bi_encoder_head_kernel, s_s_valid=S_s)

    cls3, rat_pad = pl.pallas_call(
        kernel,
        grid=(n_steps,),
        in_specs=in_specs,
        out_specs=out_specs,
        out_shape=out_shape,
        compiler_params=pltpu.CompilerParams(
            dimension_semantics=("parallel",),        # batch axis -> both v7x TCs
            vmem_limit_bytes=vmem_limit,
        ),
        cost_estimate=cost,
    )(seq_rp.astype(bf16), seq_sp.astype(bf16), *weight_args)

    # RobertaClassificationHead on the CLS token, batched once over B in XLA
    # (in-kernel M=1 matmuls would waste an MXU pass and force 3-lane stores).
    cls = cls3.reshape(B, H)                                          # (B, H) f32
    hdn = jax.nn.relu(cls @ params["w_dense"] + params["b_dense"][0])
    logits_empathy = hdn @ params["w_outproj"] + params["b_outproj"][0]
    logits_rationales = rat_pad[:, :S_r, :R]                          # drop pads
    return logits_empathy, logits_rationales


def init_params(key, hidden=128, empathy_num_labels=3, rationale_num_labels=2, std=0.02):
    """Deterministic init matching _init_weights: Linear W ~ N(0, 0.02), bias = 0."""
    ks = jax.random.split(key, 7)
    w = lambda k, shape: (std * jax.random.normal(k, shape)).astype(jnp.float32)
    z = lambda n: jnp.zeros((1, n), jnp.float32)
    return {
        # MultiHeadAttention(heads=1, d_model=hidden)
        "wq": w(ks[0], (hidden, hidden)), "bq": z(hidden),
        "wk": w(ks[1], (hidden, hidden)), "bk": z(hidden),
        "wv": w(ks[2], (hidden, hidden)), "bv": z(hidden),
        "wo": w(ks[3], (hidden, hidden)), "bo": z(hidden),
        # RobertaClassificationHead
        "w_dense": w(ks[4], (hidden, hidden)), "b_dense": z(hidden),
        "w_outproj": w(ks[5], (hidden, empathy_num_labels)), "b_outproj": z(empathy_num_labels),
        # rationale classifier
        "w_rat": w(ks[6], (hidden, rationale_num_labels)), "b_rat": z(rationale_num_labels),
    }


def reference_forward(seq_rp, seq_sp, p):
    """Pure-JAX f32 reference mirroring the PyTorch forward (eval mode)."""
    H = seq_rp.shape[-1]
    q = seq_rp @ p["wq"] + p["bq"]
    k = seq_sp @ p["wk"] + p["bk"]
    v = seq_sp @ p["wv"] + p["bv"]
    scores = jnp.einsum("brh,bsh->brs", q, k) / math.sqrt(H)
    pr = jax.nn.softmax(scores, axis=-1)
    attn = jnp.einsum("brs,bsh->brh", pr, v) @ p["wo"] + p["bo"]
    seq = seq_rp + attn
    cls = seq[:, 0, :]
    hdn = jax.nn.relu(cls @ p["w_dense"] + p["b_dense"][0])
    emp = hdn @ p["w_outproj"] + p["b_outproj"][0]
    rat = seq @ p["w_rat"] + p["b_rat"]
    return emp, rat


if __name__ == "__main__":
    B, S_R, S_S, H = 8, 16, 24, 128      # small shapes; module default hidden is 768

    key = jax.random.PRNGKey(0)
    k_p, k_rp, k_sp = jax.random.split(key, 3)
    params = init_params(k_p, hidden=H)

    # Stand-ins for the RoBERTa encoder sequence outputs.
    seq_rp = jax.random.normal(k_rp, (B, S_R, H), jnp.float32)
    seq_sp = jax.random.normal(k_sp, (B, S_S, H), jnp.float32)

    fwd = jax.jit(bi_encoder_forward)
    logits_empathy, logits_rationales = jax.block_until_ready(
        fwd(seq_rp, seq_sp, params)
    )

    ref_emp, ref_rat = reference_forward(seq_rp, seq_sp, params)
    assert logits_empathy.shape == (B, 3)
    assert logits_rationales.shape == (B, S_R, 2)
    # bf16 operands with f32 accumulation -> compare against the f32 reference
    # with a tolerance that covers bf16 input/weight quantization.
    assert jnp.allclose(logits_empathy, ref_emp, atol=2e-2, rtol=2e-2)
    assert jnp.allclose(logits_rationales, ref_rat, atol=2e-2, rtol=2e-2)

    print("KERNEL_OK")
</pallas_src>

<mosaic_0001>
module attributes {stable_mosaic.version = 11 : i64} {
  func.func @_bi_encoder_head_kernel(%arg0: i32, %arg1: memref<2x16x128xbf16, #tpu.memory_space<vmem>>, %arg2: memref<2x128x128xbf16, #tpu.memory_space<vmem>>, %arg3: memref<128x128xbf16, #tpu.memory_space<vmem>>, %arg4: memref<1x128xf32, #tpu.memory_space<vmem>>, %arg5: memref<128x256xbf16, #tpu.memory_space<vmem>>, %arg6: memref<1x256xf32, #tpu.memory_space<vmem>>, %arg7: memref<128x128xbf16, #tpu.memory_space<vmem>>, %arg8: memref<1x128xf32, #tpu.memory_space<vmem>>, %arg9: memref<128x128xbf16, #tpu.memory_space<vmem>>, %arg10: memref<1x128xf32, #tpu.memory_space<vmem>>, %arg11: memref<1x2x128xf32, #tpu.memory_space<vmem>>, %arg12: memref<2x16x128xf32, #tpu.memory_space<vmem>>) attributes {dimension_semantics = [#tpu.dimension_semantics<parallel>], iteration_bounds = array<i64: 4>, scalar_prefetch = 0 : i64, scratch_operands = 0 : i64, tpu.core_type = #tpu.core_type<tc>, window_params = [{transform_indices = @transform_0, window_bounds = array<i64: 2, 16, 128>}, {transform_indices = @transform_1, window_bounds = array<i64: 2, 128, 128>}, {pipeline_mode = #tpu.pipeline_mode<synchronous>, transform_indices = @transform_2, window_bounds = array<i64: 128, 128>}, {pipeline_mode = #tpu.pipeline_mode<synchronous>, transform_indices = @transform_3, window_bounds = array<i64: 1, 128>}, {pipeline_mode = #tpu.pipeline_mode<synchronous>, transform_indices = @transform_4, window_bounds = array<i64: 128, 256>}, {pipeline_mode = #tpu.pipeline_mode<synchronous>, transform_indices = @transform_5, window_bounds = array<i64: 1, 256>}, {pipeline_mode = #tpu.pipeline_mode<synchronous>, transform_indices = @transform_6, window_bounds = array<i64: 128, 128>}, {pipeline_mode = #tpu.pipeline_mode<synchronous>, transform_indices = @transform_7, window_bounds = array<i64: 1, 128>}, {pipeline_mode = #tpu.pipeline_mode<synchronous>, transform_indices = @transform_8, window_bounds = array<i64: 128, 128>}, {pipeline_mode = #tpu.pipeline_mode<synchronous>, transform_indices = @transform_9, window_bounds = array<i64: 1, 128>}, {transform_indices = @transform_10, window_bounds = array<i64: 1, 2, 128>}, {transform_indices = @transform_11, window_bounds = array<i64: 2, 16, 128>}]} {
    %c0 = arith.constant 0 : index
    %c0_0 = arith.constant 0 : index
    %c0_1 = arith.constant 0 : index
    %0 = vector.load %arg1[%c0, %c0_0, %c0_1] : memref<2x16x128xbf16, #tpu.memory_space<vmem>>, vector<2x16x128xbf16>
    %c0_2 = arith.constant 0 : index
    %c0_3 = arith.constant 0 : index
    %c0_4 = arith.constant 0 : index
    %1 = vector.load %arg2[%c0_2, %c0_3, %c0_4] : memref<2x128x128xbf16, #tpu.memory_space<vmem>>, vector<2x128x128xbf16>
    %2 = vector.shape_cast %0 : vector<2x16x128xbf16> to vector<32x128xbf16>
    %3 = vector.shape_cast %1 : vector<2x128x128xbf16> to vector<256x128xbf16>
    %c0_5 = arith.constant 0 : index
    %c0_6 = arith.constant 0 : index
    %4 = vector.load %arg3[%c0_5, %c0_6] : memref<128x128xbf16, #tpu.memory_space<vmem>>, vector<128x128xbf16>
    %cst = arith.constant dense<0.000000e+00> : vector<32x128xf32>
    %5 = tpu.matmul %2, %4, %cst {dimension_numbers = #tpu.dot_dimension_numbers<[1], [0], [0], [1], [0, 0, 1, 1], [], []>} : vector<32x128xbf16>, vector<128x128xbf16>, vector<32x128xf32> -> vector<32x128xf32>
    %c0_7 = arith.constant 0 : index
    %c0_8 = arith.constant 0 : index
    %6 = vector.load %arg4[%c0_7, %c0_8] : memref<1x128xf32, #tpu.memory_space<vmem>>, vector<1x128xf32>
    %7 = vector.broadcast %6 : vector<1x128xf32> to vector<32x128xf32>
    %8 = arith.addf %5, %7 : vector<32x128xf32>
    %c0_9 = arith.constant 0 : index
    %c0_10 = arith.constant 0 : index
    %9 = vector.load %arg5[%c0_9, %c0_10] : memref<128x256xbf16, #tpu.memory_space<vmem>>, vector<128x256xbf16>
    %cst_11 = arith.constant dense<0.000000e+00> : vector<256x256xf32>
    %10 = tpu.matmul %3, %9, %cst_11 {dimension_numbers = #tpu.dot_dimension_numbers<[1], [0], [0], [1], [0, 0, 1, 1], [], []>} : vector<256x128xbf16>, vector<128x256xbf16>, vector<256x256xf32> -> vector<256x256xf32>
    %c0_12 = arith.constant 0 : index
    %c0_13 = arith.constant 0 : index
    %11 = vector.load %arg6[%c0_12, %c0_13] : memref<1x256xf32, #tpu.memory_space<vmem>>, vector<1x256xf32>
    %12 = vector.broadcast %11 : vector<1x256xf32> to vector<256x256xf32>
    %13 = arith.addf %10, %12 : vector<256x256xf32>
    %14 = arith.truncf %13 : vector<256x256xf32> to vector<256x256xbf16>
    %15 = vector.shape_cast %8 : vector<32x128xf32> to vector<2x16x128xf32>
    %16 = arith.truncf %15 : vector<2x16x128xf32> to vector<2x16x128xbf16>
    %17 = vector.extract_strided_slice %14 {offsets = [0, 0], sizes = [256, 128], strides = [1, 1]} : vector<256x256xbf16> to vector<256x128xbf16>
    %18 = vector.shape_cast %17 : vector<256x128xbf16> to vector<2x128x128xbf16>
    %19 = vector.extract_strided_slice %14 {offsets = [0, 128], sizes = [256, 128], strides = [1, 1]} : vector<256x256xbf16> to vector<256x128xbf16>
    %20 = vector.shape_cast %19 : vector<256x128xbf16> to vector<2x128x128xbf16>
    "tpu.trace_start"() <{level = 10 : i32, message = "brh,bsh->brs"}> : () -> ()
    %cst_14 = arith.constant dense<0.000000e+00> : vector<2x16x128xf32>
    %21 = tpu.matmul %16, %18, %cst_14 {dimension_numbers = #tpu.dot_dimension_numbers<[2], [2], [1], [1], [0, 0, 0, 1, 1, 1], [0], [0]>} : vector<2x16x128xbf16>, vector<2x128x128xbf16>, vector<2x16x128xf32> -> vector<2x16x128xf32>
    "tpu.trace_stop"() : () -> ()
    %22 = tpu.iota {dimensions = array<i32: 2>} : vector<1x1x128xi32>
    %c24_i32 = arith.constant 24 : i32
    %23 = vector.broadcast %c24_i32 : i32 to vector<1x1x128xi32>
    %24 = arith.cmpi slt, %22, %23 : vector<1x1x128xi32>
    %cst_15 = arith.constant -1.000000e+09 : f32
    %25 = vector.shape_cast %24 : vector<1x1x128xi1> to vector<1x1x128xi1>
    %26 = vector.broadcast %25 : vector<1x1x128xi1> to vector<2x16x128xi1>
    %27 = vector.broadcast %cst_15 : f32 to vector<2x16x128xf32>
    %28 = arith.select %26, %21, %27 : vector<2x16x128xi1>, vector<2x16x128xf32>
    %cst_16 = arith.constant dense<0xFF800000> : vector<2x16xf32>
    %29 = vector.multi_reduction <maximumf>, %28, %cst_16 [2] : vector<2x16x128xf32> to vector<2x16xf32>
    %30 = vector.shape_cast %29 : vector<2x16xf32> to vector<2x16x1xf32>
    %31 = vector.broadcast %30 : vector<2x16x1xf32> to vector<2x16x128xf32>
    %32 = arith.subf %28, %31 : vector<2x16x128xf32>
    %33 = math.exp %32 : vector<2x16x128xf32>
    %cst_17 = arith.constant dense<0.000000e+00> : vector<2x16xf32>
    %34 = vector.multi_reduction <add>, %33, %cst_17 [2] : vector<2x16x128xf32> to vector<2x16xf32>
    %35 = vector.shape_cast %34 : vector<2x16xf32> to vector<2x16x1xf32>
    %36 = tpu.reciprocal %35 {approx = true} : vector<2x16x1xf32> -> vector<2x16x1xf32>
    %37 = vector.broadcast %36 : vector<2x16x1xf32> to vector<2x16x128xf32>
    %38 = arith.mulf %33, %37 : vector<2x16x128xf32>
    %39 = arith.truncf %38 : vector<2x16x128xf32> to vector<2x16x128xbf16>
    "tpu.trace_start"() <{level = 10 : i32, message = "brs,bsh->brh"}> : () -> ()
    %cst_18 = arith.constant dense<0.000000e+00> : vector<2x16x128xf32>
    %40 = tpu.matmul %39, %20, %cst_18 {dimension_numbers = #tpu.dot_dimension_numbers<[2], [1], [1], [2], [0, 0, 0, 1, 1, 2], [0], [0]>} : vector<2x16x128xbf16>, vector<2x128x128xbf16>, vector<2x16x128xf32> -> vector<2x16x128xf32>
    "tpu.trace_stop"() : () -> ()
    %41 = vector.shape_cast %40 : vector<2x16x128xf32> to vector<32x128xf32>
    %42 = arith.truncf %41 : vector<32x128xf32> to vector<32x128xbf16>
    %c0_19 = arith.constant 0 : index
    %c0_20 = arith.constant 0 : index
    %43 = vector.load %arg7[%c0_19, %c0_20] : memref<128x128xbf16, #tpu.memory_space<vmem>>, vector<128x128xbf16>
    %cst_21 = arith.constant dense<0.000000e+00> : vector<32x128xf32>
    %44 = tpu.matmul %42, %43, %cst_21 {dimension_numbers = #tpu.dot_dimension_numbers<[1], [0], [0], [1], [0, 0, 1, 1], [], []>} : vector<32x128xbf16>, vector<128x128xbf16>, vector<32x128xf32> -> vector<32x128xf32>
    %c0_22 = arith.constant 0 : index
    %c0_23 = arith.constant 0 : index
    %45 = vector.load %arg8[%c0_22, %c0_23] : memref<1x128xf32, #tpu.memory_space<vmem>>, vector<1x128xf32>
    %46 = vector.broadcast %45 : vector<1x128xf32> to vector<32x128xf32>
    %47 = arith.addf %44, %46 : vector<32x128xf32>
    %48 = arith.extf %2 : vector<32x128xbf16> to vector<32x128xf32>
    %49 = arith.addf %48, %47 : vector<32x128xf32>
    %50 = arith.truncf %49 : vector<32x128xf32> to vector<32x128xbf16>
    %c0_24 = arith.constant 0 : index
    %c0_25 = arith.constant 0 : index
    %51 = vector.load %arg9[%c0_24, %c0_25] : memref<128x128xbf16, #tpu.memory_space<vmem>>, vector<128x128xbf16>
    %cst_26 = arith.constant dense<0.000000e+00> : vector<32x128xf32>
    %52 = tpu.matmul %50, %51, %cst_26 {dimension_numbers = #tpu.dot_dimension_numbers<[1], [0], [0], [1], [0, 0, 1, 1], [], []>} : vector<32x128xbf16>, vector<128x128xbf16>, vector<32x128xf32> -> vector<32x128xf32>
    %c0_27 = arith.constant 0 : index
    %c0_28 = arith.constant 0 : index
    %53 = vector.load %arg10[%c0_27, %c0_28] : memref<1x128xf32, #tpu.memory_space<vmem>>, vector<1x128xf32>
    %54 = vector.broadcast %53 : vector<1x128xf32> to vector<32x128xf32>
    %55 = arith.addf %52, %54 : vector<32x128xf32>
    %56 = vector.shape_cast %55 : vector<32x128xf32> to vector<2x16x128xf32>
    %c0_29 = arith.constant 0 : index
    %c0_30 = arith.constant 0 : index
    %c0_31 = arith.constant 0 : index
    %57 = vector.load %arg12[%c0_29, %c0_30, %c0_31] : memref<2x16x128xf32, #tpu.memory_space<vmem>>, vector<2x16x128xf32>
    tpu.vector_store %arg12[%c0_29, %c0_30, %c0_31], %56 {strides = array<i32>} : memref<2x16x128xf32, #tpu.memory_space<vmem>>, vector<2x16x128xf32>,
    %58 = vector.shape_cast %49 : vector<32x128xf32> to vector<2x16x128xf32>
    %59 = vector.extract_strided_slice %58 {offsets = [0, 0, 0], sizes = [2, 1, 128], strides = [1, 1, 1]} : vector<2x16x128xf32> to vector<2x1x128xf32>
    %60 = vector.shape_cast %59 : vector<2x1x128xf32> to vector<2x128xf32>
    %c0_32 = arith.constant 0 : index
    %c0_33 = arith.constant 0 : index
    %c0_34 = arith.constant 0 : index
    %61 = vector.load %arg11[%c0_32, %c0_33, %c0_34] : memref<1x2x128xf32, #tpu.memory_space<vmem>>, vector<1x2x128xf32>
    %62 = vector.shape_cast %61 : vector<1x2x128xf32> to vector<2x128xf32>
    %63 = vector.shape_cast %60 : vector<2x128xf32> to vector<1x2x128xf32>
    tpu.vector_store %arg11[%c0_32, %c0_33, %c0_34], %63 {strides = array<i32>} : memref<1x2x128xf32, #tpu.memory_space<vmem>>, vector<1x2x128xf32>,
    return
  }
  func.func @transform_0(%arg0: i32) -> (i32, i32, i32) {
    %c0_i32 = arith.constant 0 : i32
    %c0_i32_0 = arith.constant 0 : i32
    %c0_i32_1 = arith.constant 0 : i32
    return %arg0, %c0_i32, %c0_i32_0 : i32, i32, i32
  }
  func.func @transform_1(%arg0: i32) -> (i32, i32, i32) {
    %c0_i32 = arith.constant 0 : i32
    %c0_i32_0 = arith.constant 0 : i32
    %c0_i32_1 = arith.constant 0 : i32
    return %arg0, %c0_i32, %c0_i32_0 : i32, i32, i32
  }
  func.func @transform_2(%arg0: i32) -> (i32, i32) {
    %c0_i32 = arith.constant 0 : i32
    %c0_i32_0 = arith.constant 0 : i32
    %c0_i32_1 = arith.constant 0 : i32
    return %c0_i32, %c0_i32_0 : i32, i32
  }
  func.func @transform_3(%arg0: i32) -> (i32, i32) {
    %c0_i32 = arith.constant 0 : i32
    %c0_i32_0 = arith.constant 0 : i32
    %c0_i32_1 = arith.constant 0 : i32
    return %c0_i32, %c0_i32_0 : i32, i32
  }
  func.func @transform_4(%arg0: i32) -> (i32, i32) {
    %c0_i32 = arith.constant 0 : i32
    %c0_i32_0 = arith.constant 0 : i32
    %c0_i32_1 = arith.constant 0 : i32
    return %c0_i32, %c0_i32_0 : i32, i32
  }
  func.func @transform_5(%arg0: i32) -> (i32, i32) {
    %c0_i32 = arith.constant 0 : i32
    %c0_i32_0 = arith.constant 0 : i32
    %c0_i32_1 = arith.constant 0 : i32
    return %c0_i32, %c0_i32_0 : i32, i32
  }
  func.func @transform_6(%arg0: i32) -> (i32, i32) {
    %c0_i32 = arith.constant 0 : i32
    %c0_i32_0 = arith.constant 0 : i32
    %c0_i32_1 = arith.constant 0 : i32
    return %c0_i32, %c0_i32_0 : i32, i32
  }
  func.func @transform_7(%arg0: i32) -> (i32, i32) {
    %c0_i32 = arith.constant 0 : i32
    %c0_i32_0 = arith.constant 0 : i32
    %c0_i32_1 = arith.constant 0 : i32
    return %c0_i32, %c0_i32_0 : i32, i32
  }
  func.func @transform_8(%arg0: i32) -> (i32, i32) {
    %c0_i32 = arith.constant 0 : i32
    %c0_i32_0 = arith.constant 0 : i32
    %c0_i32_1 = arith.constant 0 : i32
    return %c0_i32, %c0_i32_0 : i32, i32
  }
  func.func @transform_9(%arg0: i32) -> (i32, i32) {
    %c0_i32 = arith.constant 0 : i32
    %c0_i32_0 = arith.constant 0 : i32
    %c0_i32_1 = arith.constant 0 : i32
    return %c0_i32, %c0_i32_0 : i32, i32
  }
  func.func @transform_10(%arg0: i32) -> (i32, i32, i32) {
    %c0_i32 = arith.constant 0 : i32
    %c0_i32_0 = arith.constant 0 : i32
    %c0_i32_1 = arith.constant 0 : i32
    return %arg0, %c0_i32, %c0_i32_0 : i32, i32, i32
  }
  func.func @transform_11(%arg0: i32) -> (i32, i32, i32) {
    %c0_i32 = arith.constant 0 : i32
    %c0_i32_0 = arith.constant 0 : i32
    %c0_i32_1 = arith.constant 0 : i32
    return %arg0, %c0_i32, %c0_i32_0 : i32, i32, i32
  }
}

</mosaic_0001>

<llo_original>
// kernel: bi_encoder_forward.1
$region0: #{bi_encoder_forward.1}
  #allocation0 [shape = 'u32[]', space=smem, size = 0x4, offset = 0x4, fixed_abs, tag = 'smem constant byte address 0x4 - core index']
  #allocation1 [shape = 'u32[144,128]{1,0:T(1,128)}', space=vmem, size = 0x12000, scoped, tag = 'internal scratch']
  %s0 = inlined_call_operand.vmem [shape: bf16[8,16,128], index: 0, kind: input, shape index: {}]
  %s1 = inlined_call_operand.vmem [shape: bf16[8,128,128], index: 1, kind: input, shape index: {}]
  %s2 = inlined_call_operand.vmem [shape: bf16[128,128], index: 2, kind: input, shape index: {}]
  %s3 = inlined_call_operand.vmem [shape: f32[1,128], index: 3, kind: input, shape index: {}]
  %s4 = inlined_call_operand.vmem [shape: bf16[128,256], index: 4, kind: input, shape index: {}]
  %s5 = inlined_call_operand.vmem [shape: f32[1,256], index: 5, kind: input, shape index: {}]
  %s6 = inlined_call_operand.vmem [shape: bf16[128,128], index: 6, kind: input, shape index: {}]
  %s7 = inlined_call_operand.vmem [shape: f32[1,128], index: 7, kind: input, shape index: {}]
  %s8 = inlined_call_operand.vmem [shape: bf16[128,128], index: 8, kind: input, shape index: {}]
  %s9 = inlined_call_operand.vmem [shape: f32[1,128], index: 9, kind: input, shape index: {}]
  %s10 = inlined_call_operand.vmem [shape: f32[4,2,128], index: 10, kind: output, shape index: {0}]
  %s11 = inlined_call_operand.vmem [shape: f32[8,16,128], index: 11, kind: output, shape index: {1}]
  %12 = xla_tuple %s10, %s11
  %s13 = sld [smem:[#allocation0]]
  $region81: #{bi_encoder_forward.1} parent=0
    _
  %s15 = ssub.s32 1, %s13
  %s16 = scalar_select 0, %s15, %s13
  loop: start=0, step=1, limit=6
  $region2: #{bi_encoder_forward.1} parent=0 // loop_pre_header
    _
  $region3: #{bi_encoder_forward.1} parent=0 // loop_header
    %s18 = sphi 0, %s22
    %p19 = scmp.ge.s32.totalorder %s18, 6
    %s28 = sphi 0, %s30
    %s31 = sphi 0, %s28
    %s32 = sphi 0, %s31
    %s48 = sphi 0, %s32
    %s54 = sphi 0, %s56
    %s57 = sphi 0, %s54
    %s58 = sphi 0, %s57
    %s74 = sphi 0, %s58
    %s78 = sphi 0, %s78
    %s80 = sphi 0, %s78
    %s81 = sphi 0, %s80
    %s95 = sphi 0, %s81
    %s99 = sphi 0, %s99
    %s101 = sphi 0, %s99
    %s102 = sphi 0, %s101
    %s116 = sphi 0, %s102
    %s120 = sphi 0, %s120
    %s122 = sphi 0, %s120
    %s123 = sphi 0, %s122
    %s137 = sphi 0, %s123
    %s141 = sphi 0, %s141
    %s143 = sphi 0, %s141
    %s144 = sphi 0, %s143
    %s158 = sphi 0, %s144
    %s162 = sphi 0, %s162
    %s164 = sphi 0, %s162
    %s165 = sphi 0, %s164
    %s179 = sphi 0, %s165
    %s183 = sphi 0, %s183
    %s185 = sphi 0, %s183
    %s186 = sphi 0, %s185
    %s200 = sphi 0, %s186
    %s204 = sphi 0, %s204
    %s206 = sphi 0, %s204
    %s207 = sphi 0, %s206
    %s221 = sphi 0, %s207
    %s225 = sphi 0, %s225
    %s227 = sphi 0, %s225
    %s228 = sphi 0, %s227
    %s242 = sphi 0, %s228
    %s248 = sphi 0, %s250
    %s251 = sphi 0, %s248
    %s252 = sphi 0, %s251
    %s268 = sphi 0, %s252
    %s274 = sphi 0, %s276
    %s277 = sphi 0, %s274
    %s278 = sphi 0, %s277
    %s294 = sphi 0, %s278
  $region4: #{bi_encoder_forward.1} parent=0 // loop_header_branch
    %21 = sbr.rel (%p19) target = $region8
  $region5: #{bi_encoder_forward.1} parent=0 // loop_body
    %s23 = ssub.s32 %s18, 1
    %s24 = ssub.s32 %s18, 2
    %s25 = sadd.s32 %s18, 1
    %s26 = ssub.s32 %s18, %s25
    %p27 = scmp.eq.s32.totalorder %s26, 0
    %s29 = sadd.s32 %s28, 1
    %s30 = scalar_select %p27, %s28, %s29
    %p33 = pneg %p27
    %p34 = scmp.eq.s32.totalorder %s18, 3
    %p35 = por %p33, %p34
    %p36 = scmp.ne.s32.totalorder %s28, %s31
    %p37 = scmp.eq.s32.totalorder %s18, 0
    %p38 = por %p36, %p37
    %p39 = scmp.ne.s32.totalorder %s28, %s31
    %p40 = scmp.eq.s32.totalorder %s23, 3
    %p41 = por %p39, %p40
    %p42 = scmp.ne.s32.totalorder %s31, %s32
    %p43 = scmp.eq.s32.totalorder %s23, 0
    %p44 = por %p42, %p43
    %p45 = scmp.ne.s32.totalorder %s31, %s32
    %p46 = scmp.eq.s32.totalorder %s24, 3
    %p47 = por %p45, %p46
    %p49 = scmp.ne.s32.totalorder %s32, %s48
    %p50 = scmp.eq.s32.totalorder %s24, 0
    %p51 = por %p49, %p50
    %s52 = ssub.s32 %s18, %s25
    %p53 = scmp.eq.s32.totalorder %s52, 0
    %s55 = sadd.s32 %s54, 1
    %s56 = scalar_select %p53, %s54, %s55
    %p59 = pneg %p53
    %p60 = scmp.eq.s32.totalorder %s18, 3
    %p61 = por %p59, %p60
    %p62 = scmp.ne.s32.totalorder %s54, %s57
    %p63 = scmp.eq.s32.totalorder %s18, 0
    %p64 = por %p62, %p63
    %p65 = scmp.ne.s32.totalorder %s54, %s57
    %p66 = scmp.eq.s32.totalorder %s23, 3
    %p67 = por %p65, %p66
    %p68 = scmp.ne.s32.totalorder %s57, %s58
    %p69 = scmp.eq.s32.totalorder %s23, 0
    %p70 = por %p68, %p69
    %p71 = scmp.ne.s32.totalorder %s57, %s58
    %p72 = scmp.eq.s32.totalorder %s24, 3
    %p73 = por %p71, %p72
    %p75 = scmp.ne.s32.totalorder %s58, %s74
    %p76 = scmp.eq.s32.totalorder %s24, 0
    %p77 = por %p75, %p76
    %s79 = sadd.s32 %s78, 1
    %p82 = scmp.eq.s32.totalorder %s18, 3
    %p83 = scmp.ne.s32.totalorder %s78, %s80
    %p84 = scmp.eq.s32.totalorder %s18, 0
    %p85 = por %p83, %p84
    %p86 = scmp.ne.s32.totalorder %s78, %s80
    %p87 = scmp.eq.s32.totalorder %s23, 3
    %p88 = por %p86, %p87
    %p89 = scmp.ne.s32.totalorder %s80, %s81
    %p90 = scmp.eq.s32.totalorder %s23, 0
    %p91 = por %p89, %p90
    %p92 = scmp.ne.s32.totalorder %s80, %s81
    %p93 = scmp.eq.s32.totalorder %s24, 3
    %p94 = por %p92, %p93
    %p96 = scmp.ne.s32.totalorder %s81, %s95
    %p97 = scmp.eq.s32.totalorder %s24, 0
    %p98 = por %p96, %p97
    %s100 = sadd.s32 %s99, 1
    %p103 = scmp.eq.s32.totalorder %s18, 3
    %p104 = scmp.ne.s32.totalorder %s99, %s101
    %p105 = scmp.eq.s32.totalorder %s18, 0
    %p106 = por %p104, %p105
    %p107 = scmp.ne.s32.totalorder %s99, %s101
    %p108 = scmp.eq.s32.totalorder %s23, 3
    %p109 = por %p107, %p108
    %p110 = scmp.ne.s32.totalorder %s101, %s102
    %p111 = scmp.eq.s32.totalorder %s23, 0
    %p112 = por %p110, %p111
    %p113 = scmp.ne.s32.totalorder %s101, %s102
    %p114 = scmp.eq.s32.totalorder %s24, 3
    %p115 = por %p113, %p114
    %p117 = scmp.ne.s32.totalorder %s102, %s116
    %p118 = scmp.eq.s32.totalorder %s24, 0
    %p119 = por %p117, %p118
    %s121 = sadd.s32 %s120, 1
    %p124 = scmp.eq.s32.totalorder %s18, 3
    %p125 = scmp.ne.s32.totalorder %s120, %s122
    %p126 = scmp.eq.s32.totalorder %s18, 0
    %p127 = por %p125, %p126
    %p128 = scmp.ne.s32.totalorder %s120, %s122
    %p129 = scmp.eq.s32.totalorder %s23, 3
    %p130 = por %p128, %p129
    %p131 = scmp.ne.s32.totalorder %s122, %s123
    %p132 = scmp.eq.s32.totalorder %s23, 0
    %p133 = por %p131, %p132
    %p134 = scmp.ne.s32.totalorder %s122, %s123
    %p135 = scmp.eq.s32.totalorder %s24, 3
    %p136 = por %p134, %p135
    %p138 = scmp.ne.s32.totalorder %s123, %s137
    %p139 = scmp.eq.s32.totalorder %s24, 0
    %p140 = por %p138, %p139
    %s142 = sadd.s32 %s141, 1
    %p145 = scmp.eq.s32.totalorder %s18, 3
    %p146 = scmp.ne.s32.totalorder %s141, %s143
    %p147 = scmp.eq.s32.totalorder %s18, 0
    %p148 = por %p146, %p147
    %p149 = scmp.ne.s32.totalorder %s141, %s143
    %p150 = scmp.eq.s32.totalorder %s23, 3
    %p151 = por %p149, %p150
    %p152 = scmp.ne.s32.totalorder %s143, %s144
    %p153 = scmp.eq.s32.totalorder %s23, 0
    %p154 = por %p152, %p153
    %p155 = scmp.ne.s32.totalorder %s143, %s144
    %p156 = scmp.eq.s32.totalorder %s24, 3
    %p157 = por %p155, %p156
    %p159 = scmp.ne.s32.totalorder %s144, %s158
    %p160 = scmp.eq.s32.totalorder %s24, 0
    %p161 = por %p159, %p160
    %s163 = sadd.s32 %s162, 1
    %p166 = scmp.eq.s32.totalorder %s18, 3
    %p167 = scmp.ne.s32.totalorder %s162, %s164
    %p168 = scmp.eq.s32.totalorder %s18, 0
    %p169 = por %p167, %p168
    %p170 = scmp.ne.s32.totalorder %s162, %s164
    %p171 = scmp.eq.s32.totalorder %s23, 3
    %p172 = por %p170, %p171
    %p173 = scmp.ne.s32.totalorder %s164, %s165
    %p174 = scmp.eq.s32.totalorder %s23, 0
    %p175 = por %p173, %p174
    %p176 = scmp.ne.s32.totalorder %s164, %s165
    %p177 = scmp.eq.s32.totalorder %s24, 3
    %p178 = por %p176, %p177
    %p180 = scmp.ne.s32.totalorder %s165, %s179
    %p181 = scmp.eq.s32.totalorder %s24, 0
    %p182 = por %p180, %p181
    %s184 = sadd.s32 %s183, 1
    %p187 = scmp.eq.s32.totalorder %s18, 3
    %p188 = scmp.ne.s32.totalorder %s183, %s185
    %p189 = scmp.eq.s32.totalorder %s18, 0
    %p190 = por %p188, %p189
    %p191 = scmp.ne.s32.totalorder %s183, %s185
    %p192 = scmp.eq.s32.totalorder %s23, 3
    %p193 = por %p191, %p192
    %p194 = scmp.ne.s32.totalorder %s185, %s186
    %p195 = scmp.eq.s32.totalorder %s23, 0
    %p196 = por %p194, %p195
    %p197 = scmp.ne.s32.totalorder %s185, %s186
    %p198 = scmp.eq.s32.totalorder %s24, 3
    %p199 = por %p197, %p198
    %p201 = scmp.ne.s32.totalorder %s186, %s200
    %p202 = scmp.eq.s32.totalorder %s24, 0
    %p203 = por %p201, %p202
    %s205 = sadd.s32 %s204, 1
    %p208 = scmp.eq.s32.totalorder %s18, 3
    %p209 = scmp.ne.s32.totalorder %s204, %s206
    %p210 = scmp.eq.s32.totalorder %s18, 0
    %p211 = por %p209, %p210
    %p212 = scmp.ne.s32.totalorder %s204, %s206
    %p213 = scmp.eq.s32.totalorder %s23, 3
    %p214 = por %p212, %p213
    %p215 = scmp.ne.s32.totalorder %s206, %s207
    %p216 = scmp.eq.s32.totalorder %s23, 0
    %p217 = por %p215, %p216
    %p218 = scmp.ne.s32.totalorder %s206, %s207
    %p219 = scmp.eq.s32.totalorder %s24, 3
    %p220 = por %p218, %p219
    %p222 = scmp.ne.s32.totalorder %s207, %s221
    %p223 = scmp.eq.s32.totalorder %s24, 0
    %p224 = por %p222, %p223
    %s226 = sadd.s32 %s225, 1
    %p229 = scmp.eq.s32.totalorder %s18, 3
    %p230 = scmp.ne.s32.totalorder %s225, %s227
    %p231 = scmp.eq.s32.totalorder %s18, 0
    %p232 = por %p230, %p231
    %p233 = scmp.ne.s32.totalorder %s225, %s227
    %p234 = scmp.eq.s32.totalorder %s23, 3
    %p235 = por %p233, %p234
    %p236 = scmp.ne.s32.totalorder %s227, %s228
    %p237 = scmp.eq.s32.totalorder %s23, 0
    %p238 = por %p236, %p237
    %p239 = scmp.ne.s32.totalorder %s227, %s228
    %p240 = scmp.eq.s32.totalorder %s24, 3
    %p241 = por %p239, %p240
    %p243 = scmp.ne.s32.totalorder %s228, %s242
    %p244 = scmp.eq.s32.totalorder %s24, 0
    %p245 = por %p243, %p244
    %s246 = ssub.s32 %s18, %s25
    %p247 = scmp.eq.s32.totalorder %s246, 0
    %s249 = sadd.s32 %s248, 1
    %s250 = scalar_select %p247, %s248, %s249
    %p253 = pneg %p247
    %p254 = scmp.eq.s32.totalorder %s18, 3
    %p255 = por %p253, %p254
    %p256 = scmp.ne.s32.totalorder %s248, %s251
    %p257 = scmp.eq.s32.totalorder %s18, 0
    %p258 = por %p256, %p257
    %p259 = scmp.ne.s32.totalorder %s248, %s251
    %p260 = scmp.eq.s32.totalorder %s23, 3
    %p261 = por %p259, %p260
    %p262 = scmp.ne.s32.totalorder %s251, %s252
    %p263 = scmp.eq.s32.totalorder %s23, 0
    %p264 = por %p262, %p263
    %p265 = scmp.ne.s32.totalorder %s251, %s252
    %p266 = scmp.eq.s32.totalorder %s24, 3
    %p267 = por %p265, %p266
    %p269 = scmp.ne.s32.totalorder %s252, %s268
    %p270 = scmp.eq.s32.totalorder %s24, 0
    %p271 = por %p269, %p270
    %s272 = ssub.s32 %s18, %s25
    %p273 = scmp.eq.s32.totalorder %s272, 0
    %s275 = sadd.s32 %s274, 1
    %s276 = scalar_select %p273, %s274, %s275
    %p279 = pneg %p273
    %p280 = scmp.eq.s32.totalorder %s18, 3
    %p281 = por %p279, %p280
    %p282 = scmp.ne.s32.totalorder %s274, %s277
    %p283 = scmp.eq.s32.totalorder %s18, 0
    %p284 = por %p282, %p283
    %p285 = scmp.ne.s32.totalorder %s274, %s277
    %p286 = scmp.eq.s32.totalorder %s23, 3
    %p287 = por %p285, %p286
    %p288 = scmp.ne.s32.totalorder %s277, %s278
    %p289 = scmp.eq.s32.totalorder %s23, 0
    %p290 = por %p288, %p289
    %p291 = scmp.ne.s32.totalorder %s277, %s278
    %p292 = scmp.eq.s32.totalorder %s24, 3
    %p293 = por %p291, %p292
    %p295 = scmp.ne.s32.totalorder %s278, %s294
    %p296 = scmp.eq.s32.totalorder %s24, 0
    %p297 = por %p295, %p296
    %p298 = scmp.le.s32.totalorder 1, %s18
    %p299 = scmp.lt.s32.totalorder %s18, 5
    %p300 = pnand %p298, %p299
    %p301 = pneg %p300
    // Predicated region
    $region9: #{bi_encoder_forward.1} parent=5 // pred_check
      _
    $region10: #{bi_encoder_forward.1} parent=5 // pred_check_branch
      %303 = sbr.rel (%p300) target = $region12
    $region11: #{bi_encoder_forward.1} parent=5 // pred_region
      %s304 = ssub.s32 %s18, 1
      // Predicated region
      $region13: #{bi_encoder_forward.1} parent=11 // pred_check
        %p305 = pneg %p91
      $region14: #{bi_encoder_forward.1} parent=11 // pred_check_branch
        %307 = sbr.rel (%p305) target = $region16
      $region15: #{bi_encoder_forward.1} parent=11 // pred_region
        _
      $region16: #{bi_encoder_forward.1} parent=11 // pred_fallthru
        _
      // Predicated region
      $region17: #{bi_encoder_forward.1} parent=11 // pred_check
        %p308 = pneg %p112
      $region18: #{bi_encoder_forward.1} parent=11 // pred_check_branch
        %310 = sbr.rel (%p308) target = $region20
      $region19: #{bi_encoder_forward.1} parent=11 // pred_region
        _
      $region20: #{bi_encoder_forward.1} parent=11 // pred_fallthru
        _
      // Predicated region
      $region21: #{bi_encoder_forward.1} parent=11 // pred_check
        %p311 = pneg %p133
      $region22: #{bi_encoder_forward.1} parent=11 // pred_check_branch
        %313 = sbr.rel (%p311) target = $region24
      $region23: #{bi_encoder_forward.1} parent=11 // pred_region
        _
      $region24: #{bi_encoder_forward.1} parent=11 // pred_fallthru
        _
      // Predicated region
      $region25: #{bi_encoder_forward.1} parent=11 // pred_check
        %p314 = pneg %p154
      $region26: #{bi_encoder_forward.1} parent=11 // pred_check_branch
        %316 = sbr.rel (%p314) target = $region28
      $region27: #{bi_encoder_forward.1} parent=11 // pred_region
        _
      $region28: #{bi_encoder_forward.1} parent=11 // pred_fallthru
        _
      // Predicated region
      $region29: #{bi_encoder_forward.1} parent=11 // pred_check
        %p317 = pneg %p175
      $region30: #{bi_encoder_forward.1} parent=11 // pred_check_branch
        %319 = sbr.rel (%p317) target = $region32
      $region31: #{bi_encoder_forward.1} parent=11 // pred_region
        _
      $region32: #{bi_encoder_forward.1} parent=11 // pred_fallthru
        _
      // Predicated region
      $region33: #{bi_encoder_forward.1} parent=11 // pred_check
        %p320 = pneg %p196
      $region34: #{bi_encoder_forward.1} parent=11 // pred_check_branch
        %322 = sbr.rel (%p320) target = $region36
      $region35: #{bi_encoder_forward.1} parent=11 // pred_region
        _
      $region36: #{bi_encoder_forward.1} parent=11 // pred_fallthru
        _
      // Predicated region
      $region37: #{bi_encoder_forward.1} parent=11 // pred_check
        %p323 = pneg %p217
      $region38: #{bi_encoder_forward.1} parent=11 // pred_check_branch
        %325 = sbr.rel (%p323) target = $region40
      $region39: #{bi_encoder_forward.1} parent=11 // pred_region
        _
      $region40: #{bi_encoder_forward.1} parent=11 // pred_fallthru
        _
      // Predicated region
      $region41: #{bi_encoder_forward.1} parent=11 // pred_check
        %p326 = pneg %p238
      $region42: #{bi_encoder_forward.1} parent=11 // pred_check_branch
        %328 = sbr.rel (%p326) target = $region44
      $region43: #{bi_encoder_forward.1} parent=11 // pred_region
        _
      $region44: #{bi_encoder_forward.1} parent=11 // pred_fallthru
        _
    $region12: #{bi_encoder_forward.1} parent=5 // pred_fallthru
      _
    %p329 = scmp.lt.s32.totalorder %s18, 4
    // Predicated region
    $region45: #{bi_encoder_forward.1} parent=5 // pred_check
      %p330 = pneg %p329
    $region46: #{bi_encoder_forward.1} parent=5 // pred_check_branch
      %332 = sbr.rel (%p330) target = $region48
    $region47: #{bi_encoder_forward.1} parent=5 // pred_region
      // Predicated region
      $region49: #{bi_encoder_forward.1} parent=47 // pred_check
        %p333 = pneg %p38
      $region50: #{bi_encoder_forward.1} parent=47 // pred_check_branch
        %335 = sbr.rel (%p333) target = $region52
      $region51: #{bi_encoder_forward.1} parent=47 // pred_region
        %s336 = smul.u32 2, %s18
        %p337 = scmp.lt.s32.totalorder %s336, 7
        %s338 = scalar_select %p337, %s336, 7
        %s339 = smul.addr %s338, 2
        %s340 = smul.addr %s339, 4
        %s341 = scalar_lea.vmem %s0, %s340
        %s342 = smul.u32 2, %s18
      $region52: #{bi_encoder_forward.1} parent=47 // pred_fallthru
        _
      // Predicated region
      $region53: #{bi_encoder_forward.1} parent=47 // pred_check
        %p343 = pneg %p64
      $region54: #{bi_encoder_forward.1} parent=47 // pred_check_branch
        %345 = sbr.rel (%p343) target = $region56
      $region55: #{bi_encoder_forward.1} parent=47 // pred_region
        %s346 = smul.u32 2, %s18
        %p347 = scmp.lt.s32.totalorder %s346, 7
        %s348 = scalar_select %p347, %s346, 7
        %s349 = smul.addr %s348, 16
        %s350 = smul.addr %s349, 4
        %s351 = scalar_lea.vmem %s1, %s350
        %s352 = smul.u32 2, %s18
      $region56: #{bi_encoder_forward.1} parent=47 // pred_fallthru
        _
    $region48: #{bi_encoder_forward.1} parent=5 // pred_fallthru
      _
    %p353 = scmp.le.s32.totalorder 1, %s18
    %p354 = scmp.lt.s32.totalorder %s18, 5
    %p355 = pnand %p353, %p354
    %p356 = pneg %p355
    // Predicated region
    $region57: #{bi_encoder_forward.1} parent=5 // pred_check
      _
    $region58: #{bi_encoder_forward.1} parent=5 // pred_check_branch
      %358 = sbr.rel (%p355) target = $region60
    $region59: #{bi_encoder_forward.1} parent=5 // pred_region
      %s359 = ssub.s32 %s18, 1
      %s360 = smul.u32 2, %s23
      %p361 = scmp.lt.s32.totalorder %s360, 7
      %s362 = scalar_select %p361, %s360, 7
      %s363 = smul.addr %s362, 2
      %s364 = smul.addr %s363, 4
      %s365 = scalar_lea.vmem %s0, %s364
      %p366 = pneg %p44
      %p367 = pneg %p41
      %s368 = smul.u32 2, %s23
      %p369 = scmp.lt.s32.totalorder %s368, 7
      %s370 = scalar_select %p369, %s368, 7
      %s371 = smul.addr %s370, 16
      %s372 = smul.addr %s371, 4
      %s373 = scalar_lea.vmem %s1, %s372
      %p374 = pneg %p70
      %p375 = pneg %p67
      %p376 = pneg %p91
      %p377 = pneg %p88
      %p378 = pneg %p112
      %p379 = pneg %p109
      %p380 = pneg %p133
      %p381 = pneg %p130
      %p382 = pneg %p154
      %p383 = pneg %p151
      %p384 = pneg %p175
      %p385 = pneg %p172
      %p386 = pneg %p196
      %p387 = pneg %p193
      %p388 = pneg %p217
      %p389 = pneg %p214
      %p390 = pneg %p238
      %p391 = pneg %p235
      %p392 = pneg %p264
      %p393 = pneg %p261
      %p394 = scmp.lt.s32.totalorder %s23, 3
      %s395 = scalar_select %p394, %s23, 3
      %s396 = smul.addr %s395, 2
      %s397 = scalar_lea.vmem %s10, %s396
      %p398 = pneg %p290
      %p399 = pneg %p287
      %s400 = smul.u32 2, %s23
      %p401 = scmp.lt.s32.totalorder %s400, 7
      %s402 = scalar_select %p401, %s400, 7
      %s403 = smul.addr %s402, 2
      %s404 = smul.addr %s403, 8
      %s405 = scalar_lea.vmem %s11, %s404
      %s406 = smul.u32 2, %s23
      %p407 = scmp.lt.s32.totalorder %s406, 7
      %s408 = scalar_select %p407, %s406, 7
      %s409 = smul.addr %s408, 2
      %s410 = smul.addr %s409, 4
      %s411 = scalar_lea.vmem %s0, %s410
      %s412 = smul.u32 2, %s23
      %s413 = smul.u32 2, %s23
      %p414 = scmp.lt.s32.totalorder %s413, 7
      %s415 = scalar_select %p414, %s413, 7
      %s416 = smul.addr %s415, 16
      %s417 = smul.addr %s416, 4
      %s418 = scalar_lea.vmem %s1, %s417
      %s419 = smul.u32 2, %s23
      %p420 = scmp.lt.s32.totalorder %s23, 3
      %s421 = scalar_select %p420, %s23, 3
      %s422 = smul.addr %s421, 2
      %s423 = scalar_lea.vmem %s10, %s422
      %s424 = smul.u32 2, %s23
      %p425 = scmp.lt.s32.totalorder %s424, 7
      %s426 = scalar_select %p425, %s424, 7
      %s427 = smul.addr %s426, 2
      %s428 = smul.addr %s427, 8
      %s429 = scalar_lea.vmem %s11, %s428
      %s430 = smul.u32 2, %s23
      %v432 = vld [vmem:[%s411] sm:$0xf]
      %v433 = vld [vmem:[%s411 + $0x4] sm:$0xf]
      %v434 = vld [vmem:[%s411 + $0x8] sm:$0xf]
      %v435 = vld [vmem:[%s411 + $0xc] sm:$0xf]
      %v436 = vld [vmem:[%s418] sm:$0xf]
      %v437 = vld [vmem:[%s418 + $0x4] sm:$0xf]
      %v438 = vld [vmem:[%s418 + $0x8] sm:$0xf]
      %v439 = vld [vmem:[%s418 + $0xc] sm:$0xf]
      %v440 = vld [vmem:[%s418 + $0x10] sm:$0xf]
      %v441 = vld [vmem:[%s418 + $0x14] sm:$0xf]
      %v442 = vld [vmem:[%s418 + $0x18] sm:$0xf]
      %v443 = vld [vmem:[%s418 + $0x1c] sm:$0xf]
      %v444 = vld [vmem:[%s418 + $0x20] sm:$0xf]
      %v445 = vld [vmem:[%s418 + $0x24] sm:$0xf]
      %v446 = vld [vmem:[%s418 + $0x28] sm:$0xf]
      %v447 = vld [vmem:[%s418 + $0x2c] sm:$0xf]
      %v448 = vld [vmem:[%s418 + $0x30] sm:$0xf]
      %v449 = vld [vmem:[%s418 + $0x34] sm:$0xf]
      %v450 = vld [vmem:[%s418 + $0x38] sm:$0xf]
      %v451 = vld [vmem:[%s418 + $0x3c] sm:$0xf]
      %v452 = vld [vmem:[%s418 + $0x40] sm:$0xf]
      %v453 = vld [vmem:[%s418 + $0x44] sm:$0xf]
      %v454 = vld [vmem:[%s418 + $0x48] sm:$0xf]
      %v455 = vld [vmem:[%s418 + $0x4c] sm:$0xf]
      %v456 = vld [vmem:[%s418 + $0x50] sm:$0xf]
      %v457 = vld [vmem:[%s418 + $0x54] sm:$0xf]
      %v458 = vld [vmem:[%s418 + $0x58] sm:$0xf]
      %v459 = vld [vmem:[%s418 + $0x5c] sm:$0xf]
      %v460 = vld [vmem:[%s418 + $0x60] sm:$0xf]
      %v461 = vld [vmem:[%s418 + $0x64] sm:$0xf]
      %v462 = vld [vmem:[%s418 + $0x68] sm:$0xf]
      %v463 = vld [vmem:[%s418 + $0x6c] sm:$0xf]
      %v464 = vld [vmem:[%s418 + $0x70] sm:$0xf]
      %v465 = vld [vmem:[%s418 + $0x74] sm:$0xf]
      %v466 = vld [vmem:[%s418 + $0x78] sm:$0xf]
      %v467 = vld [vmem:[%s418 + $0x7c] sm:$0xf]
      %v468 = vld [vmem:[%s2] sm:$0xf]
      %v469 = vld [vmem:[%s2 + $0x4] sm:$0xf]
      %v470 = vld [vmem:[%s2 + $0x8] sm:$0xf]
      %v471 = vld [vmem:[%s2 + $0xc] sm:$0xf]
      %v472 = vld [vmem:[%s2 + $0x10] sm:$0xf]
      %v473 = vld [vmem:[%s2 + $0x14] sm:$0xf]
      %v474 = vld [vmem:[%s2 + $0x18] sm:$0xf]
      %v475 = vld [vmem:[%s2 + $0x1c] sm:$0xf]
      %v476 = vld [vmem:[%s2 + $0x20] sm:$0xf]
      %v477 = vld [vmem:[%s2 + $0x24] sm:$0xf]
      %v478 = vld [vmem:[%s2 + $0x28] sm:$0xf]
      %v479 = vld [vmem:[%s2 + $0x2c] sm:$0xf]
      %v480 = vld [vmem:[%s2 + $0x30] sm:$0xf]
      %v481 = vld [vmem:[%s2 + $0x34] sm:$0xf]
      %v482 = vld [vmem:[%s2 + $0x38] sm:$0xf]
      %v483 = vld [vmem:[%s2 + $0x3c] sm:$0xf]
      %v484 = vld [vmem:[%s3] sm:$0x1]
      %v486 = vlaneseq
      %v487 = vshrl.u32 %v486, 7
      %v488 = vsub.s32 0, %v487
      %v489 = vrot.slane %v484, %v488
      %v495 = vunpack.c.l.b16 %v432
      %v496 = vunpack.c.l.b16 %v433
      %v497 = vunpack.c.l.b16 %v434
      %v498 = vunpack.c.l.b16 %v435
      %v499 = vpack.c.b16 %v496, %v495
      %v500 = vpack.c.b16 %v498, %v497
      %v519 = vunpack.c.l.b16 %v468
      %v520 = vunpack.c.l.b16 %v469
      %v521 = vunpack.c.l.b16 %v470
      %v522 = vunpack.c.l.b16 %v471
      %v523 = vunpack.c.l.b16 %v472
      %v524 = vunpack.c.l.b16 %v473
      %v525 = vunpack.c.l.b16 %v474
      %v526 = vunpack.c.l.b16 %v475
      %v527 = vunpack.c.l.b16 %v476
      %v528 = vunpack.c.l.b16 %v477
      %v529 = vunpack.c.l.b16 %v478
      %v530 = vunpack.c.l.b16 %v479
      %v531 = vunpack.c.l.b16 %v480
      %v532 = vunpack.c.l.b16 %v481
      %v533 = vunpack.c.l.b16 %v482
      %v534 = vunpack.c.l.b16 %v483
      %v535 = vpack.c.b16 %v520, %v519
      %v536 = vpack.c.b16 %v522, %v521
      %v537 = vpack.c.b16 %v524, %v523
      %v538 = vpack.c.b16 %v526, %v525
      %v539 = vpack.c.b16 %v528, %v527
      %v540 = vpack.c.b16 %v530, %v529
      %v541 = vpack.c.b16 %v532, %v531
      %v542 = vpack.c.b16 %v534, %v533
      %551 = vmatprep.subr.bf16.mxu0 0
      %552 = vmatpush1.bf16.msra.mxu0 %v535
      %553 = vmatprep.subr.bf16.mxu0 0
      %554 = vmatpush1.bf16.msra.mxu0 %v536
      %555 = vmatprep.subr.bf16.mxu0 0
      %556 = vmatpush1.bf16.msra.mxu0 %v537
      %557 = vmatprep.subr.bf16.mxu0 0
      %558 = vmatpush1.bf16.msra.mxu0 %v538
      %559 = vmatprep.subr.bf16.mxu0 0
      %560 = vmatpush1.bf16.msra.mxu0 %v539
      %561 = vmatprep.subr.bf16.mxu0 0
      %562 = vmatpush1.bf16.msra.mxu0 %v540
      %563 = vmatprep.subr.bf16.mxu0 0
      %564 = vmatpush1.bf16.msra.mxu0 %v541
      %565 = vmatprep.subr.bf16.mxu0 0
      %566 = vmatpush1.bf16.msra.mxu0 %v542
      %567 = vmatprep.subr.bf16.mxu0 0
      %568 = vmatpush1.bf16.msra.mxu0 0
      %569 = vmatprep.subr.bf16.mxu0 0
      %570 = vmatpush1.bf16.msra.mxu0 0
      %571 = vmatprep.subr.bf16.mxu0 0
      %572 = vmatpush1.bf16.msra.mxu0 0
      %573 = vmatprep.subr.bf16.mxu0 0
      %574 = vmatpush1.bf16.msra.mxu0 0
      %575 = vmatprep.subr.bf16.mxu0 0
      %576 = vmatpush1.bf16.msra.mxu0 0
      %577 = vmatprep.subr.bf16.mxu0 0
      %578 = vmatpush1.bf16.msra.mxu0 0
      %579 = vmatprep.subr.bf16.mxu0 0
      %580 = vmatpush1.bf16.msra.mxu0 0
      %581 = vmatprep.subr.bf16.mxu0 0
      %582 = vmatpush1.bf16.msra.mxu0 0
      %583 = vmatprep.mubr.bf16.mxu0 0
      %584 = vmatmul.mubr.bf16.gmra.mrb[0].mxu0 %v499
      %v585 = vpop.f32.mrb[0].mxu0
      %v586 = vadd.f32 %v489, %v585
      %v587 = vpop.f32.mrb[0].mxu0
      %v588 = vpop.f32.mrb[0].mxu0
      %v589 = vadd.f32 %v489, %v588
      %v590 = vpop.f32.mrb[0].mxu0
      %591 = vmatprep.mubr.bf16.mxu0 0
      %592 = vmatmul.mubr.bf16.gmra.mrb[0].mxu0 %v500
      %v593 = vpop.f32.mrb[0].mxu0
      %v594 = vadd.f32 %v489, %v593
      %v595 = vpop.f32.mrb[0].mxu0
      %v596 = vpop.f32.mrb[0].mxu0
      %v597 = vadd.f32 %v489, %v596
      %v598 = vpop.f32.mrb[0].mxu0
      %599 = vdwg.mxu0
      %v600 = vld [vmem:[%s4] sm:$0xff]
      %v601 = vld [vmem:[%s4 + $0x8] sm:$0xff]
      %v602 = vld [vmem:[%s4 + $0x10] sm:$0xff]
      %v603 = vld [vmem:[%s4 + $0x18] sm:$0xff]
      %v604 = vld [vmem:[%s4 + $0x20] sm:$0xff]
      %v605 = vld [vmem:[%s4 + $0x28] sm:$0xff]
      %v606 = vld [vmem:[%s4 + $0x30] sm:$0xff]
      %v607 = vld [vmem:[%s4 + $0x38] sm:$0xff]
      %v608 = vld [vmem:[%s4 + $0x40] sm:$0xff]
      %v609 = vld [vmem:[%s4 + $0x48] sm:$0xff]
      %v610 = vld [vmem:[%s4 + $0x50] sm:$0xff]
      %v611 = vld [vmem:[%s4 + $0x58] sm:$0xff]
      %v612 = vld [vmem:[%s4 + $0x60] sm:$0xff]
      %v613 = vld [vmem:[%s4 + $0x68] sm:$0xff]
      %v614 = vld [vmem:[%s4 + $0x70] sm:$0xff]
      %v615 = vld [vmem:[%s4 + $0x78] sm:$0xff]
      %v616 = vld [vmem:[%s5] sm:$0x3]
      %v618 = vlaneseq
      %v619 = vshrl.u32 %v618, 7
      %v620 = vsub.s32 0, %v619
      %v621 = vrot.slane %v616, %v620
      %v622 = vlaneseq
      %v623 = vshrl.u32 %v622, 7
      %v624 = vsub.s32 1, %v623
      %v625 = vrot.slane %v616, %v624
      %v660 = vunpack.c.l.b16 %v436
      %v661 = vunpack.c.l.b16 %v437
      %v662 = vunpack.c.l.b16 %v438
      %v663 = vunpack.c.l.b16 %v439
      %v664 = vunpack.c.l.b16 %v440
      %v665 = vunpack.c.l.b16 %v441
      %v666 = vunpack.c.l.b16 %v442
      %v667 = vunpack.c.l.b16 %v443
      %v668 = vunpack.c.l.b16 %v444
      %v669 = vunpack.c.l.b16 %v445
      %v670 = vunpack.c.l.b16 %v446
      %v671 = vunpack.c.l.b16 %v447
      %v672 = vunpack.c.l.b16 %v448
      %v673 = vunpack.c.l.b16 %v449
      %v674 = vunpack.c.l.b16 %v450
      %v675 = vunpack.c.l.b16 %v451
      %v676 = vunpack.c.l.b16 %v452
      %v677 = vunpack.c.l.b16 %v453
      %v678 = vunpack.c.l.b16 %v454
      %v679 = vunpack.c.l.b16 %v455
      %v680 = vunpack.c.l.b16 %v456
      %v681 = vunpack.c.l.b16 %v457
      %v682 = vunpack.c.l.b16 %v458
      %v683 = vunpack.c.l.b16 %v459
      %v684 = vunpack.c.l.b16 %v460
      %v685 = vunpack.c.l.b16 %v461
      %v686 = vunpack.c.l.b16 %v462
      %v687 = vunpack.c.l.b16 %v463
      %v688 = vunpack.c.l.b16 %v464
      %v689 = vunpack.c.l.b16 %v465
      %v690 = vunpack.c.l.b16 %v466
      %v691 = vunpack.c.l.b16 %v467
      %v692 = vpack.c.b16 %v661, %v660
      %v693 = vpack.c.b16 %v663, %v662
      %v694 = vpack.c.b16 %v665, %v664
      %v695 = vpack.c.b16 %v667, %v666
      %v696 = vpack.c.b16 %v669, %v668
      %v697 = vpack.c.b16 %v671, %v670
      %v698 = vpack.c.b16 %v673, %v672
      %v699 = vpack.c.b16 %v675, %v674
      %v700 = vpack.c.b16 %v677, %v676
      %v701 = vpack.c.b16 %v679, %v678
      %v702 = vpack.c.b16 %v681, %v680
      %v703 = vpack.c.b16 %v683, %v682
      %v704 = vpack.c.b16 %v685, %v684
      %v705 = vpack.c.b16 %v687, %v686
      %v706 = vpack.c.b16 %v689, %v688
      %v707 = vpack.c.b16 %v691, %v690
      %v740 = vunpack.c.l.b16 %v600
      %v741 = vunpack.c.h.b16 %v600
      %v742 = vunpack.c.l.b16 %v601
      %v743 = vunpack.c.h.b16 %v601
      %v744 = vunpack.c.l.b16 %v602
      %v745 = vunpack.c.h.b16 %v602
      %v746 = vunpack.c.l.b16 %v603
      %v747 = vunpack.c.h.b16 %v603
      %v748 = vunpack.c.l.b16 %v604
      %v749 = vunpack.c.h.b16 %v604
      %v750 = vunpack.c.l.b16 %v605
      %v751 = vunpack.c.h.b16 %v605
      %v752 = vunpack.c.l.b16 %v606
      %v753 = vunpack.c.h.b16 %v606
      %v754 = vunpack.c.l.b16 %v607
      %v755 = vunpack.c.h.b16 %v607
      %v756 = vunpack.c.l.b16 %v608
      %v757 = vunpack.c.h.b16 %v608
      %v758 = vunpack.c.l.b16 %v609
      %v759 = vunpack.c.h.b16 %v609
      %v760 = vunpack.c.l.b16 %v610
      %v761 = vunpack.c.h.b16 %v610
      %v762 = vunpack.c.l.b16 %v611
      %v763 = vunpack.c.h.b16 %v611
      %v764 = vunpack.c.l.b16 %v612
      %v765 = vunpack.c.h.b16 %v612
      %v766 = vunpack.c.l.b16 %v613
      %v767 = vunpack.c.h.b16 %v613
      %v768 = vunpack.c.l.b16 %v614
      %v769 = vunpack.c.h.b16 %v614
      %v770 = vunpack.c.l.b16 %v615
      %v771 = vunpack.c.h.b16 %v615
      %v772 = vpack.c.b16 %v742, %v740
      %v773 = vpack.c.b16 %v743, %v741
      %v774 = vpack.c.b16 %v746, %v744
      %v775 = vpack.c.b16 %v747, %v745
      %v776 = vpack.c.b16 %v750, %v748
      %v777 = vpack.c.b16 %v751, %v749
      %v778 = vpack.c.b16 %v754, %v752
      %v779 = vpack.c.b16 %v755, %v753
      %v780 = vpack.c.b16 %v758, %v756
      %v781 = vpack.c.b16 %v759, %v757
      %v782 = vpack.c.b16 %v762, %v760
      %v783 = vpack.c.b16 %v763, %v761
      %v784 = vpack.c.b16 %v766, %v764
      %v785 = vpack.c.b16 %v767, %v765
      %v786 = vpack.c.b16 %v770, %v768
      %v787 = vpack.c.b16 %v771, %v769
      %804 = vmatprep.subr.bf16.mxu0 %v773
      %805 = vmatpush1.bf16.msra.mxu0 %v772
      %806 = vmatprep.subr.bf16.mxu0 %v775
      %807 = vmatpush1.bf16.msra.mxu0 %v774
      %808 = vmatprep.subr.bf16.mxu0 %v777
      %809 = vmatpush1.bf16.msra.mxu0 %v776
      %810 = vmatprep.subr.bf16.mxu0 %v779
      %811 = vmatpush1.bf16.msra.mxu0 %v778
      %812 = vmatprep.subr.bf16.mxu0 %v781
      %813 = vmatpush1.bf16.msra.mxu0 %v780
      %814 = vmatprep.subr.bf16.mxu0 %v783
      %815 = vmatpush1.bf16.msra.mxu0 %v782
      %816 = vmatprep.subr.bf16.mxu0 %v785
      %817 = vmatpush1.bf16.msra.mxu0 %v784
      %818 = vmatprep.subr.bf16.mxu0 %v787
      %819 = vmatpush1.bf16.msra.mxu0 %v786
      %820 = vmatprep.subr.bf16.mxu0 0
      %821 = vmatpush1.bf16.msra.mxu0 0
      %822 = vmatprep.subr.bf16.mxu0 0
      %823 = vmatpush1.bf16.msra.mxu0 0
      %824 = vmatprep.subr.bf16.mxu0 0
      %825 = vmatpush1.bf16.msra.mxu0 0
      %826 = vmatprep.subr.bf16.mxu0 0
      %827 = vmatpush1.bf16.msra.mxu0 0
      %828 = vmatprep.subr.bf16.mxu0 0
      %829 = vmatpush1.bf16.msra.mxu0 0
      %830 = vmatprep.subr.bf16.mxu0 0
      %831 = vmatpush1.bf16.msra.mxu0 0
      %832 = vmatprep.subr.bf16.mxu0 0
      %833 = vmatpush1.bf16.msra.mxu0 0
      %834 = vmatprep.subr.bf16.mxu0 0
      %835 = vmatpush1.bf16.msra.mxu0 0
      %836 = vmatprep.mubr.bf16.mxu0 0
      %837 = vmatmul.mubr.bf16.gmra.mrb[0].mxu0 %v692
      %v838 = vpop.f32.mrb[0].mxu0
      %v839 = vadd.f32 %v621, %v838
      %v840 = vpop.f32.mrb[0].mxu0
      %v841 = vadd.f32 %v625, %v840
      %v842 = vpop.f32.mrb[0].mxu0
      %v843 = vadd.f32 %v621, %v842
      %v844 = vpop.f32.mrb[0].mxu0
      %v845 = vadd.f32 %v625, %v844
      %846 = vmatprep.mubr.bf16.mxu0 0
      %847 = vmatmul.mubr.bf16.gmra.mrb[0].mxu0 %v693
      %v848 = vpop.f32.mrb[0].mxu0
      %v849 = vadd.f32 %v621, %v848
      %v850 = vpop.f32.mrb[0].mxu0
      %v851 = vadd.f32 %v625, %v850
      %v852 = vpop.f32.mrb[0].mxu0
      %v853 = vadd.f32 %v621, %v852
      %v854 = vpop.f32.mrb[0].mxu0
      %v855 = vadd.f32 %v625, %v854
      %856 = vmatprep.mubr.bf16.mxu0 0
      %857 = vmatmul.mubr.bf16.gmra.mrb[0].mxu0 %v694
      %v858 = vpop.f32.mrb[0].mxu0
      %v859 = vadd.f32 %v621, %v858
      %v860 = vpop.f32.mrb[0].mxu0
      %v861 = vadd.f32 %v625, %v860
      %v862 = vpop.f32.mrb[0].mxu0
      %v863 = vadd.f32 %v621, %v862
      %v864 = vpop.f32.mrb[0].mxu0
      %v865 = vadd.f32 %v625, %v864
      %866 = vmatprep.mubr.bf16.mxu0 0
      %867 = vmatmul.mubr.bf16.gmra.mrb[0].mxu0 %v695
      %v868 = vpop.f32.mrb[0].mxu0
      %v869 = vadd.f32 %v621, %v868
      %v870 = vpop.f32.mrb[0].mxu0
      %v871 = vadd.f32 %v625, %v870
      %v872 = vpop.f32.mrb[0].mxu0
      %v873 = vadd.f32 %v621, %v872
      %v874 = vpop.f32.mrb[0].mxu0
      %v875 = vadd.f32 %v625, %v874
      %876 = vmatprep.mubr.bf16.mxu0 0
      %877 = vmatmul.mubr.bf16.gmra.mrb[0].mxu0 %v696
      %v878 = vpop.f32.mrb[0].mxu0
      %v879 = vadd.f32 %v621, %v878
      %v880 = vpop.f32.mrb[0].mxu0
      %v881 = vadd.f32 %v625, %v880
      %v882 = vpop.f32.mrb[0].mxu0
      %v883 = vadd.f32 %v621, %v882
      %v884 = vpop.f32.mrb[0].mxu0
      %v885 = vadd.f32 %v625, %v884
      %886 = vmatprep.mubr.bf16.mxu0 0
      %887 = vmatmul.mubr.bf16.gmra.mrb[0].mxu0 %v697
      %v888 = vpop.f32.mrb[0].mxu0
      %v889 = vadd.f32 %v621, %v888
      %v890 = vpop.f32.mrb[0].mxu0
      %v891 = vadd.f32 %v625, %v890
      %v892 = vpop.f32.mrb[0].mxu0
      %v893 = vadd.f32 %v621, %v892
      %v894 = vpop.f32.mrb[0].mxu0
      %v895 = vadd.f32 %v625, %v894
      %896 = vmatprep.mubr.bf16.mxu0 0
      %897 = vmatmul.mubr.bf16.gmra.mrb[0].mxu0 %v698
      %v898 = vpop.f32.mrb[0].mxu0
      %v899 = vadd.f32 %v621, %v898
      %v900 = vpop.f32.mrb[0].mxu0
      %v901 = vadd.f32 %v625, %v900
      %v902 = vpop.f32.mrb[0].mxu0
      %v903 = vadd.f32 %v621, %v902
      %v904 = vpop.f32.mrb[0].mxu0
      %v905 = vadd.f32 %v625, %v904
      %906 = vmatprep.mubr.bf16.mxu0 0
      %907 = vmatmul.mubr.bf16.gmra.mrb[0].mxu0 %v699
      %v908 = vpop.f32.mrb[0].mxu0
      %v909 = vadd.f32 %v621, %v908
      %v910 = vpop.f32.mrb[0].mxu0
      %v911 = vadd.f32 %v625, %v910
      %v912 = vpop.f32.mrb[0].mxu0
      %v913 = vadd.f32 %v621, %v912
      %v914 = vpop.f32.mrb[0].mxu0
      %v915 = vadd.f32 %v625, %v914
      %916 = vmatprep.mubr.bf16.mxu0 0
      %917 = vmatmul.mubr.bf16.gmra.mrb[0].mxu0 %v700
      %v918 = vpop.f32.mrb[0].mxu0
      %v919 = vadd.f32 %v621, %v918
      %v920 = vpop.f32.mrb[0].mxu0
      %v921 = vadd.f32 %v625, %v920
      %v922 = vpop.f32.mrb[0].mxu0
      %v923 = vadd.f32 %v621, %v922
      %v924 = vpop.f32.mrb[0].mxu0
      %v925 = vadd.f32 %v625, %v924
      %926 = vmatprep.mubr.bf16.mxu0 0
      %927 = vmatmul.mubr.bf16.gmra.mrb[0].mxu0 %v701
      %v928 = vpop.f32.mrb[0].mxu0
      %v929 = vadd.f32 %v621, %v928
      %v930 = vpop.f32.mrb[0].mxu0
      %v931 = vadd.f32 %v625, %v930
      %v932 = vpop.f32.mrb[0].mxu0
      %v933 = vadd.f32 %v621, %v932
      %v934 = vpop.f32.mrb[0].mxu0
      %v935 = vadd.f32 %v625, %v934
      %936 = vmatprep.mubr.bf16.mxu0 0
      %937 = vmatmul.mubr.bf16.gmra.mrb[0].mxu0 %v702
      %v938 = vpop.f32.mrb[0].mxu0
      %v939 = vadd.f32 %v621, %v938
      %v940 = vpop.f32.mrb[0].mxu0
      %v941 = vadd.f32 %v625, %v940
      %v942 = vpop.f32.mrb[0].mxu0
      %v943 = vadd.f32 %v621, %v942
      %v944 = vpop.f32.mrb[0].mxu0
      %v945 = vadd.f32 %v625, %v944
      %946 = vmatprep.mubr.bf16.mxu0 0
      %947 = vmatmul.mubr.bf16.gmra.mrb[0].mxu0 %v703
      %v948 = vpop.f32.mrb[0].mxu0
      %v949 = vadd.f32 %v621, %v948
      %v950 = vpop.f32.mrb[0].mxu0
      %v951 = vadd.f32 %v625, %v950
      %v952 = vpop.f32.mrb[0].mxu0
      %v953 = vadd.f32 %v621, %v952
      %v954 = vpop.f32.mrb[0].mxu0
      %v955 = vadd.f32 %v625, %v954
      %956 = vmatprep.mubr.bf16.mxu0 0
      %957 = vmatmul.mubr.bf16.gmra.mrb[0].mxu0 %v704
      %v958 = vpop.f32.mrb[0].mxu0
      %v959 = vadd.f32 %v621, %v958
      %v960 = vpop.f32.mrb[0].mxu0
      %v961 = vadd.f32 %v625, %v960
      %v962 = vpop.f32.mrb[0].mxu0
      %v963 = vadd.f32 %v621, %v962
      %v964 = vpop.f32.mrb[0].mxu0
      %v965 = vadd.f32 %v625, %v964
      %966 = vmatprep.mubr.bf16.mxu0 0
      %967 = vmatmul.mubr.bf16.gmra.mrb[0].mxu0 %v705
      %v968 = vpop.f32.mrb[0].mxu0
      %v969 = vadd.f32 %v621, %v968
      %v970 = vpop.f32.mrb[0].mxu0
      %v971 = vadd.f32 %v625, %v970
      %v972 = vpop.f32.mrb[0].mxu0
      %v973 = vadd.f32 %v621, %v972
      %v974 = vpop.f32.mrb[0].mxu0
      %v975 = vadd.f32 %v625, %v974
      %976 = vmatprep.mubr.bf16.mxu0 0
      %977 = vmatmul.mubr.bf16.gmra.mrb[0].mxu0 %v706
      %v978 = vpop.f32.mrb[0].mxu0
      %v979 = vadd.f32 %v621, %v978
      %v980 = vpop.f32.mrb[0].mxu0
      %v981 = vadd.f32 %v625, %v980
      %v982 = vpop.f32.mrb[0].mxu0
      %v983 = vadd.f32 %v621, %v982
      %v984 = vpop.f32.mrb[0].mxu0
      %v985 = vadd.f32 %v625, %v984
      %986 = vmatprep.mubr.bf16.mxu0 0
      %987 = vmatmul.mubr.bf16.gmra.mrb[0].mxu0 %v707
      %v988 = vpop.f32.mrb[0].mxu0
      %v989 = vadd.f32 %v621, %v988
      %v990 = vpop.f32.mrb[0].mxu0
      %v991 = vadd.f32 %v625, %v990
      %v992 = vpop.f32.mrb[0].mxu0
      %v993 = vadd.f32 %v621, %v992
      %v994 = vpop.f32.mrb[0].mxu0
      %v995 = vadd.f32 %v625, %v994
      %996 = vdwg.mxu0
      %v997 = vpack.c.bf16 %v843, %v839
      %v998 = vpack.c.bf16 %v845, %v841
      %v999 = vpack.c.bf16 %v853, %v849
      %v1000 = vpack.c.bf16 %v855, %v851
      %v1001 = vpack.c.bf16 %v863, %v859
      %v1002 = vpack.c.bf16 %v865, %v861
      %v1003 = vpack.c.bf16 %v873, %v869
      %v1004 = vpack.c.bf16 %v875, %v871
      %v1005 = vpack.c.bf16 %v883, %v879
      %v1006 = vpack.c.bf16 %v885, %v881
      %v1007 = vpack.c.bf16 %v893, %v889
      %v1008 = vpack.c.bf16 %v895, %v891
      %v1009 = vpack.c.bf16 %v903, %v899
      %v1010 = vpack.c.bf16 %v905, %v901
      %v1011 = vpack.c.bf16 %v913, %v909
      %v1012 = vpack.c.bf16 %v915, %v911
      %v1013 = vpack.c.bf16 %v923, %v919
      %v1014 = vpack.c.bf16 %v925, %v921
      %v1015 = vpack.c.bf16 %v933, %v929
      %v1016 = vpack.c.bf16 %v935, %v931
      %v1017 = vpack.c.bf16 %v943, %v939
      %v1018 = vpack.c.bf16 %v945, %v941
      %v1019 = vpack.c.bf16 %v953, %v949
      %v1020 = vpack.c.bf16 %v955, %v951
      %v1021 = vpack.c.bf16 %v963, %v959
      %v1022 = vpack.c.bf16 %v965, %v961
      %v1023 = vpack.c.bf16 %v973, %v969
      %v1024 = vpack.c.bf16 %v975, %v971
      %v1025 = vpack.c.bf16 %v983, %v979
      %v1026 = vpack.c.bf16 %v985, %v981
      %v1027 = vpack.c.bf16 %v993, %v989
      %v1028 = vpack.c.bf16 %v995, %v991
      %v1029 = vpack.c.bf16 %v589, %v586
      %v1030 = vpack.c.bf16 %v597, %v594
      %1031 = vmatprep.subr.bf16.mxu0 0
      %1032 = vmatpush1.bf16.xpose.msra.mxu0 %v997
      %1033 = vmatprep.subr.bf16.mxu0 0
      %1034 = vmatpush1.bf16.xpose.msra.mxu0 %v999
      %1035 = vmatprep.subr.bf16.mxu0 0
      %1036 = vmatpush1.bf16.xpose.msra.mxu0 %v1001
      %1037 = vmatprep.subr.bf16.mxu0 0
      %1038 = vmatpush1.bf16.xpose.msra.mxu0 %v1003
      %1039 = vmatprep.subr.bf16.mxu0 0
      %1040 = vmatpush1.bf16.xpose.msra.mxu0 %v1005
      %1041 = vmatprep.subr.bf16.mxu0 0
      %1042 = vmatpush1.bf16.xpose.msra.mxu0 %v1007
      %1043 = vmatprep.subr.bf16.mxu0 0
      %1044 = vmatpush1.bf16.xpose.msra.mxu0 %v1009
      %1045 = vmatprep.subr.bf16.mxu0 0
      %1046 = vmatpush1.bf16.xpose.msra.mxu0 %v1011
      %1047 = vmatprep.subr.bf16.mxu0 0
      %1048 = vmatpush1.bf16.xpose.msra.mxu0 0
      %1049 = vmatprep.subr.bf16.mxu0 0
      %1050 = vmatpush1.bf16.xpose.msra.mxu0 0
      %1051 = vmatprep.subr.bf16.mxu0 0
      %1052 = vmatpush1.bf16.xpose.msra.mxu0 0
      %1053 = vmatprep.subr.bf16.mxu0 0
      %1054 = vmatpush1.bf16.xpose.msra.mxu0 0
      %1055 = vmatprep.subr.bf16.mxu0 0
      %1056 = vmatpush1.bf16.xpose.msra.mxu0 0
      %1057 = vmatprep.subr.bf16.mxu0 0
      %1058 = vmatpush1.bf16.xpose.msra.mxu0 0
      %1059 = vmatprep.subr.bf16.mxu0 0
      %1060 = vmatpush1.bf16.xpose.msra.mxu0 0
      %1061 = vmatprep.subr.bf16.mxu0 0
      %1062 = vmatpush1.bf16.xpose.msra.mxu0 0
      %1063 = vmatprep.mubr.bf16.mxu0 0
      %1064 = vmatmul.mubr.bf16.gmra.mrb[0].mxu0 %v1029
      %v1065 = vpop.f32.mrb[0].mxu0
      %v1066 = vadd.f32 0.0, %v1065
      %v1067 = vpop.f32.mrb[0].mxu0
      %v1068 = vpop.f32.mrb[0].mxu0
      %v1069 = vadd.f32 0.0, %v1068
      %v1070 = vpop.f32.mrb[0].mxu0
      %1071 = vdwg.mxu0
      %1072 = vmatprep.subr.bf16.mxu0 0
      %1073 = vmatpush1.bf16.xpose.msra.mxu0 %v1013
      %1074 = vmatprep.subr.bf16.mxu0 0
      %1075 = vmatpush1.bf16.xpose.msra.mxu0 %v1015
      %1076 = vmatprep.subr.bf16.mxu0 0
      %1077 = vmatpush1.bf16.xpose.msra.mxu0 %v1017
      %1078 = vmatprep.subr.bf16.mxu0 0
      %1079 = vmatpush1.bf16.xpose.msra.mxu0 %v1019
      %1080 = vmatprep.subr.bf16.mxu0 0
      %1081 = vmatpush1.bf16.xpose.msra.mxu0 %v1021
      %1082 = vmatprep.subr.bf16.mxu0 0
      %1083 = vmatpush1.bf16.xpose.msra.mxu0 %v1023
      %1084 = vmatprep.subr.bf16.mxu0 0
      %1085 = vmatpush1.bf16.xpose.msra.mxu0 %v1025
      %1086 = vmatprep.subr.bf16.mxu0 0
      %1087 = vmatpush1.bf16.xpose.msra.mxu0 %v1027
      %1088 = vmatprep.subr.bf16.mxu0 0
      %1089 = vmatpush1.bf16.xpose.msra.mxu0 0
      %1090 = vmatprep.subr.bf16.mxu0 0
      %1091 = vmatpush1.bf16.xpose.msra.mxu0 0
      %1092 = vmatprep.subr.bf16.mxu0 0
      %1093 = vmatpush1.bf16.xpose.msra.mxu0 0
      %1094 = vmatprep.subr.bf16.mxu0 0
      %1095 = vmatpush1.bf16.xpose.msra.mxu0 0
      %1096 = vmatprep.subr.bf16.mxu0 0
      %1097 = vmatpush1.bf16.xpose.msra.mxu0 0
      %1098 = vmatprep.subr.bf16.mxu0 0
      %1099 = vmatpush1.bf16.xpose.msra.mxu0 0
      %1100 = vmatprep.subr.bf16.mxu0 0
      %1101 = vmatpush1.bf16.xpose.msra.mxu0 0
      %1102 = vmatprep.subr.bf16.mxu0 0
      %1103 = vmatpush1.bf16.xpose.msra.mxu0 0
      %1104 = vmatprep.mubr.bf16.mxu0 0
      %1105 = vmatmul.mubr.bf16.gmra.mrb[0].mxu0 %v1030
      %v1106 = vpop.f32.mrb[0].mxu0
      %v1107 = vadd.f32 0.0, %v1106
      %v1108 = vpop.f32.mrb[0].mxu0
      %v1109 = vpop.f32.mrb[0].mxu0
      %v1110 = vadd.f32 0.0, %v1109
      %v1111 = vpop.f32.mrb[0].mxu0
      %1112 = vdwg.mxu0
      %v1113 = vlaneseq
      %v1114 = vand.u32 %v1113, 127
      %vm1115 = vcmp.lt.s32.totalorder %v1114, 24
      %v1116 = vsel %vm1115, 1, 0
      %vm1117 = vcmp.eq.s32.totalorder %v1116, 1
      %v1118 = vsel %vm1117, %v1066, -1e+09
      %v1119 = vsel %vm1117, %v1069, -1e+09
      %v1120 = vsel %vm1117, %v1107, -1e+09
      %v1121 = vsel %vm1117, %v1110, -1e+09
      %1122 = vmax.xlane.f32.xlu0 %v1118
      %v1123 = vpop.xlane.xlu0 %1122
      %1124 = vmax.xlane.f32.xlu0 %v1119
      %v1125 = vpop.xlane.xlu0 %1124
      %1126 = vmax.xlane.f32.xlu0 %v1120
      %v1127 = vpop.xlane.xlu0 %1126
      %1128 = vmax.xlane.f32.xlu0 %v1121
      %v1129 = vpop.xlane.xlu0 %1128
      %v1130 = vsub.f32 %v1118, %v1123
      %v1131 = vsub.f32 %v1119, %v1125
      %v1132 = vsub.f32 %v1120, %v1127
      %v1133 = vsub.f32 %v1121, %v1129
      %v1134 = vmul.f32 %v1130, 1.442695
      %v1135 = vpow.pop %v1134
      %v1136 = vmul.f32 %v1131, 1.442695
      %v1137 = vpow.pop %v1136
      %v1138 = vmul.f32 %v1132, 1.442695
      %v1139 = vpow.pop %v1138
      %v1140 = vmul.f32 %v1133, 1.442695
      %v1141 = vpow.pop %v1140
      %1142 = vadd.xlane.f32.xlu0 %v1135
      %v1143 = vpop.xlane.xlu0 %1142
      %1144 = vadd.xlane.f32.xlu0 %v1137
      %v1145 = vpop.xlane.xlu0 %1144
      %1146 = vadd.xlane.f32.xlu0 %v1139
      %v1147 = vpop.xlane.xlu0 %1146
      %1148 = vadd.xlane.f32.xlu0 %v1141
      %v1149 = vpop.xlane.xlu0 %1148
      %v1150 = vrcp.pop %v1143
      %v1151 = vrcp.pop %v1145
      %v1152 = vrcp.pop %v1147
      %v1153 = vrcp.pop %v1149
      %v1154 = vmul.f32 %v1135, %v1150
      %v1155 = vmul.f32 %v1137, %v1151
      %v1156 = vmul.f32 %v1139, %v1152
      %v1157 = vmul.f32 %v1141, %v1153
      %v1158 = vpack.c.bf16 %v1155, %v1154
      %v1159 = vpack.c.bf16 %v1157, %v1156
      %1160 = vmatprep.subr.bf16.mxu0 0
      %1161 = vmatpush1.bf16.msra.mxu0 %v998
      %1162 = vmatprep.subr.bf16.mxu0 0
      %1163 = vmatpush1.bf16.msra.mxu0 %v1000
      %1164 = vmatprep.subr.bf16.mxu0 0
      %1165 = vmatpush1.bf16.msra.mxu0 %v1002
      %1166 = vmatprep.subr.bf16.mxu0 0
      %1167 = vmatpush1.bf16.msra.mxu0 %v1004
      %1168 = vmatprep.subr.bf16.mxu0 0
      %1169 = vmatpush1.bf16.msra.mxu0 %v1006
      %1170 = vmatprep.subr.bf16.mxu0 0
      %1171 = vmatpush1.bf16.msra.mxu0 %v1008
      %1172 = vmatprep.subr.bf16.mxu0 0
      %1173 = vmatpush1.bf16.msra.mxu0 %v1010
      %1174 = vmatprep.subr.bf16.mxu0 0
      %1175 = vmatpush1.bf16.msra.mxu0 %v1012
      %1176 = vmatprep.subr.bf16.mxu0 0
      %1177 = vmatpush1.bf16.msra.mxu0 0
      %1178 = vmatprep.subr.bf16.mxu0 0
      %1179 = vmatpush1.bf16.msra.mxu0 0
      %1180 = vmatprep.subr.bf16.mxu0 0
      %1181 = vmatpush1.bf16.msra.mxu0 0
      %1182 = vmatprep.subr.bf16.mxu0 0
      %1183 = vmatpush1.bf16.msra.mxu0 0
      %1184 = vmatprep.subr.bf16.mxu0 0
      %1185 = vmatpush1.bf16.msra.mxu0 0
      %1186 = vmatprep.subr.bf16.mxu0 0
      %1187 = vmatpush1.bf16.msra.mxu0 0
      %1188 = vmatprep.subr.bf16.mxu0 0
      %1189 = vmatpush1.bf16.msra.mxu0 0
      %1190 = vmatprep.subr.bf16.mxu0 0
      %1191 = vmatpush1.bf16.msra.mxu0 0
      %1192 = vmatprep.mubr.bf16.mxu0 0
      %1193 = vmatmul.mubr.bf16.gmra.mrb[0].mxu0 %v1158
      %v1194 = vpop.f32.mrb[0].mxu0
      %v1195 = vadd.f32 0.0, %v1194
      %v1196 = vpop.f32.mrb[0].mxu0
      %v1197 = vpop.f32.mrb[0].mxu0
      %v1198 = vadd.f32 0.0, %v1197
      %v1199 = vpop.f32.mrb[0].mxu0
      %1200 = vdwg.mxu0
      %1201 = vmatprep.subr.bf16.mxu0 0
      %1202 = vmatpush1.bf16.msra.mxu0 %v1014
      %1203 = vmatprep.subr.bf16.mxu0 0
      %1204 = vmatpush1.bf16.msra.mxu0 %v1016
      %1205 = vmatprep.subr.bf16.mxu0 0
      %1206 = vmatpush1.bf16.msra.mxu0 %v1018
      %1207 = vmatprep.subr.bf16.mxu0 0
      %1208 = vmatpush1.bf16.msra.mxu0 %v1020
      %1209 = vmatprep.subr.bf16.mxu0 0
      %1210 = vmatpush1.bf16.msra.mxu0 %v1022
      %1211 = vmatprep.subr.bf16.mxu0 0
      %1212 = vmatpush1.bf16.msra.mxu0 %v1024
      %1213 = vmatprep.subr.bf16.mxu0 0
      %1214 = vmatpush1.bf16.msra.mxu0 %v1026
      %1215 = vmatprep.subr.bf16.mxu0 0
      %1216 = vmatpush1.bf16.msra.mxu0 %v1028
      %1217 = vmatprep.subr.bf16.mxu0 0
      %1218 = vmatpush1.bf16.msra.mxu0 0
      %1219 = vmatprep.subr.bf16.mxu0 0
      %1220 = vmatpush1.bf16.msra.mxu0 0
      %1221 = vmatprep.subr.bf16.mxu0 0
      %1222 = vmatpush1.bf16.msra.mxu0 0
      %1223 = vmatprep.subr.bf16.mxu0 0
      %1224 = vmatpush1.bf16.msra.mxu0 0
      %1225 = vmatprep.subr.bf16.mxu0 0
      %1226 = vmatpush1.bf16.msra.mxu0 0
      %1227 = vmatprep.subr.bf16.mxu0 0
      %1228 = vmatpush1.bf16.msra.mxu0 0
      %1229 = vmatprep.subr.bf16.mxu0 0
      %1230 = vmatpush1.bf16.msra.mxu0 0
      %1231 = vmatprep.subr.bf16.mxu0 0
      %1232 = vmatpush1.bf16.msra.mxu0 0
      %1233 = vmatprep.mubr.bf16.mxu0 0
      %1234 = vmatmul.mubr.bf16.gmra.mrb[0].mxu0 %v1159
      %v1235 = vpop.f32.mrb[0].mxu0
      %v1236 = vadd.f32 0.0, %v1235
      %v1237 = vpop.f32.mrb[0].mxu0
      %v1238 = vpop.f32.mrb[0].mxu0
      %v1239 = vadd.f32 0.0, %v1238
      %v1240 = vpop.f32.mrb[0].mxu0
      %1241 = vdwg.mxu0
      %v1242 = vpack.c.bf16 %v1198, %v1195
      %v1243 = vpack.c.bf16 %v1239, %v1236
      %v1244 = vld [vmem:[%s6] sm:$0xf]
      %v1245 = vld [vmem:[%s6 + $0x4] sm:$0xf]
      %v1246 = vld [vmem:[%s6 + $0x8] sm:$0xf]
      %v1247 = vld [vmem:[%s6 + $0xc] sm:$0xf]
      %v1248 = vld [vmem:[%s6 + $0x10] sm:$0xf]
      %v1249 = vld [vmem:[%s6 + $0x14] sm:$0xf]
      %v1250 = vld [vmem:[%s6 + $0x18] sm:$0xf]
      %v1251 = vld [vmem:[%s6 + $0x1c] sm:$0xf]
      %v1252 = vld [vmem:[%s6 + $0x20] sm:$0xf]
      %v1253 = vld [vmem:[%s6 + $0x24] sm:$0xf]
      %v1254 = vld [vmem:[%s6 + $0x28] sm:$0xf]
      %v1255 = vld [vmem:[%s6 + $0x2c] sm:$0xf]
      %v1256 = vld [vmem:[%s6 + $0x30] sm:$0xf]
      %v1257 = vld [vmem:[%s6 + $0x34] sm:$0xf]
      %v1258 = vld [vmem:[%s6 + $0x38] sm:$0xf]
      %v1259 = vld [vmem:[%s6 + $0x3c] sm:$0xf]
      %v1260 = vld [vmem:[%s7] sm:$0x1]
      %v1262 = vlaneseq
      %v1263 = vshrl.u32 %v1262, 7
      %v1264 = vsub.s32 0, %v1263
      %v1265 = vrot.slane %v1260, %v1264
      %v1283 = vunpack.c.l.b16 %v1244
      %v1284 = vunpack.c.l.b16 %v1245
      %v1285 = vunpack.c.l.b16 %v1246
      %v1286 = vunpack.c.l.b16 %v1247
      %v1287 = vunpack.c.l.b16 %v1248
      %v1288 = vunpack.c.l.b16 %v1249
      %v1289 = vunpack.c.l.b16 %v1250
      %v1290 = vunpack.c.l.b16 %v1251
      %v1291 = vunpack.c.l.b16 %v1252
      %v1292 = vunpack.c.l.b16 %v1253
      %v1293 = vunpack.c.l.b16 %v1254
      %v1294 = vunpack.c.l.b16 %v1255
      %v1295 = vunpack.c.l.b16 %v1256
      %v1296 = vunpack.c.l.b16 %v1257
      %v1297 = vunpack.c.l.b16 %v1258
      %v1298 = vunpack.c.l.b16 %v1259
      %v1299 = vpack.c.b16 %v1284, %v1283
      %v1300 = vpack.c.b16 %v1286, %v1285
      %v1301 = vpack.c.b16 %v1288, %v1287
      %v1302 = vpack.c.b16 %v1290, %v1289
      %v1303 = vpack.c.b16 %v1292, %v1291
      %v1304 = vpack.c.b16 %v1294, %v1293
      %v1305 = vpack.c.b16 %v1296, %v1295
      %v1306 = vpack.c.b16 %v1298, %v1297
      %1315 = vmatprep.subr.bf16.mxu0 0
      %1316 = vmatpush1.bf16.msra.mxu0 %v1299
      %1317 = vmatprep.subr.bf16.mxu0 0
      %1318 = vmatpush1.bf16.msra.mxu0 %v1300
      %1319 = vmatprep.subr.bf16.mxu0 0
      %1320 = vmatpush1.bf16.msra.mxu0 %v1301
      %1321 = vmatprep.subr.bf16.mxu0 0
      %1322 = vmatpush1.bf16.msra.mxu0 %v1302
      %1323 = vmatprep.subr.bf16.mxu0 0
      %1324 = vmatpush1.bf16.msra.mxu0 %v1303
      %1325 = vmatprep.subr.bf16.mxu0 0
      %1326 = vmatpush1.bf16.msra.mxu0 %v1304
      %1327 = vmatprep.subr.bf16.mxu0 0
      %1328 = vmatpush1.bf16.msra.mxu0 %v1305
      %1329 = vmatprep.subr.bf16.mxu0 0
      %1330 = vmatpush1.bf16.msra.mxu0 %v1306
      %1331 = vmatprep.subr.bf16.mxu0 0
      %1332 = vmatpush1.bf16.msra.mxu0 0
      %1333 = vmatprep.subr.bf16.mxu0 0
      %1334 = vmatpush1.bf16.msra.mxu0 0
      %1335 = vmatprep.subr.bf16.mxu0 0
      %1336 = vmatpush1.bf16.msra.mxu0 0
      %1337 = vmatprep.subr.bf16.mxu0 0
      %1338 = vmatpush1.bf16.msra.mxu0 0
      %1339 = vmatprep.subr.bf16.mxu0 0
      %1340 = vmatpush1.bf16.msra.mxu0 0
      %1341 = vmatprep.subr.bf16.mxu0 0
      %1342 = vmatpush1.bf16.msra.mxu0 0
      %1343 = vmatprep.subr.bf16.mxu0 0
      %1344 = vmatpush1.bf16.msra.mxu0 0
      %1345 = vmatprep.subr.bf16.mxu0 0
      %1346 = vmatpush1.bf16.msra.mxu0 0
      %1347 = vmatprep.mubr.bf16.mxu0 0
      %1348 = vmatmul.mubr.bf16.gmra.mrb[0].mxu0 %v1242
      %v1349 = vpop.f32.mrb[0].mxu0
      %v1350 = vadd.f32 %v1265, %v1349
      %v1351 = vpop.f32.mrb[0].mxu0
      %v1352 = vpop.f32.mrb[0].mxu0
      %v1353 = vadd.f32 %v1265, %v1352
      %v1354 = vpop.f32.mrb[0].mxu0
      %1355 = vmatprep.mubr.bf16.mxu0 0
      %1356 = vmatmul.mubr.bf16.gmra.mrb[0].mxu0 %v1243
      %v1357 = vpop.f32.mrb[0].mxu0
      %v1358 = vadd.f32 %v1265, %v1357
      %v1359 = vpop.f32.mrb[0].mxu0
      %v1360 = vpop.f32.mrb[0].mxu0
      %v1361 = vadd.f32 %v1265, %v1360
      %v1362 = vpop.f32.mrb[0].mxu0
      %1363 = vdwg.mxu0
      %v1364 = vunpack.c.l.bf16 %v432
      %v1365 = vunpack.c.l.bf16 %v433
      %v1366 = vunpack.c.l.bf16 %v434
      %v1367 = vunpack.c.l.bf16 %v435
      %v1368 = vadd.f32 %v1364, %v1350
      %v1369 = vadd.f32 %v1365, %v1353
      %v1370 = vadd.f32 %v1366, %v1358
      %v1371 = vadd.f32 %v1367, %v1361
      %v1372 = vpack.c.bf16 %v1369, %v1368
      %v1373 = vpack.c.bf16 %v1371, %v1370
      %v1374 = vld [vmem:[%s8] sm:$0xf]
      %v1375 = vld [vmem:[%s8 + $0x4] sm:$0xf]
      %v1376 = vld [vmem:[%s8 + $0x8] sm:$0xf]
      %v1377 = vld [vmem:[%s8 + $0xc] sm:$0xf]
      %v1378 = vld [vmem:[%s8 + $0x10] sm:$0xf]
      %v1379 = vld [vmem:[%s8 + $0x14] sm:$0xf]
      %v1380 = vld [vmem:[%s8 + $0x18] sm:$0xf]
      %v1381 = vld [vmem:[%s8 + $0x1c] sm:$0xf]
      %v1382 = vld [vmem:[%s8 + $0x20] sm:$0xf]
      %v1383 = vld [vmem:[%s8 + $0x24] sm:$0xf]
      %v1384 = vld [vmem:[%s8 + $0x28] sm:$0xf]
      %v1385 = vld [vmem:[%s8 + $0x2c] sm:$0xf]
      %v1386 = vld [vmem:[%s8 + $0x30] sm:$0xf]
      %v1387 = vld [vmem:[%s8 + $0x34] sm:$0xf]
      %v1388 = vld [vmem:[%s8 + $0x38] sm:$0xf]
      %v1389 = vld [vmem:[%s8 + $0x3c] sm:$0xf]
      %v1390 = vld [vmem:[%s9] sm:$0x1]
      %v1392 = vlaneseq
      %v1393 = vshrl.u32 %v1392, 7
      %v1394 = vsub.s32 0, %v1393
      %v1395 = vrot.slane %v1390, %v1394
      %v1413 = vunpack.c.l.b16 %v1374
      %v1414 = vunpack.c.l.b16 %v1375
      %v1415 = vunpack.c.l.b16 %v1376
      %v1416 = vunpack.c.l.b16 %v1377
      %v1417 = vunpack.c.l.b16 %v1378
      %v1418 = vunpack.c.l.b16 %v1379
      %v1419 = vunpack.c.l.b16 %v1380
      %v1420 = vunpack.c.l.b16 %v1381
      %v1421 = vunpack.c.l.b16 %v1382
      %v1422 = vunpack.c.l.b16 %v1383
      %v1423 = vunpack.c.l.b16 %v1384
      %v1424 = vunpack.c.l.b16 %v1385
      %v1425 = vunpack.c.l.b16 %v1386
      %v1426 = vunpack.c.l.b16 %v1387
      %v1427 = vunpack.c.l.b16 %v1388
      %v1428 = vunpack.c.l.b16 %v1389
      %v1429 = vpack.c.b16 %v1414, %v1413
      %v1430 = vpack.c.b16 %v1416, %v1415
      %v1431 = vpack.c.b16 %v1418, %v1417
      %v1432 = vpack.c.b16 %v1420, %v1419
      %v1433 = vpack.c.b16 %v1422, %v1421
      %v1434 = vpack.c.b16 %v1424, %v1423
      %v1435 = vpack.c.b16 %v1426, %v1425
      %v1436 = vpack.c.b16 %v1428, %v1427
      %1445 = vmatprep.subr.bf16.mxu0 0
      %1446 = vmatpush1.bf16.msra.mxu0 %v1429
      %1447 = vmatprep.subr.bf16.mxu0 0
      %1448 = vmatpush1.bf16.msra.mxu0 %v1430
      %1449 = vmatprep.subr.bf16.mxu0 0
      %1450 = vmatpush1.bf16.msra.mxu0 %v1431
      %1451 = vmatprep.subr.bf16.mxu0 0
      %1452 = vmatpush1.bf16.msra.mxu0 %v1432
      %1453 = vmatprep.subr.bf16.mxu0 0
      %1454 = vmatpush1.bf16.msra.mxu0 %v1433
      %1455 = vmatprep.subr.bf16.mxu0 0
      %1456 = vmatpush1.bf16.msra.mxu0 %v1434
      %1457 = vmatprep.subr.bf16.mxu0 0
      %1458 = vmatpush1.bf16.msra.mxu0 %v1435
      %1459 = vmatprep.subr.bf16.mxu0 0
      %1460 = vmatpush1.bf16.msra.mxu0 %v1436
      %1461 = vmatprep.subr.bf16.mxu0 0
      %1462 = vmatpush1.bf16.msra.mxu0 0
      %1463 = vmatprep.subr.bf16.mxu0 0
      %1464 = vmatpush1.bf16.msra.mxu0 0
      %1465 = vmatprep.subr.bf16.mxu0 0
      %1466 = vmatpush1.bf16.msra.mxu0 0
      %1467 = vmatprep.subr.bf16.mxu0 0
      %1468 = vmatpush1.bf16.msra.mxu0 0
      %1469 = vmatprep.subr.bf16.mxu0 0
      %1470 = vmatpush1.bf16.msra.mxu0 0
      %1471 = vmatprep.subr.bf16.mxu0 0
      %1472 = vmatpush1.bf16.msra.mxu0 0
      %1473 = vmatprep.subr.bf16.mxu0 0
      %1474 = vmatpush1.bf16.msra.mxu0 0
      %1475 = vmatprep.subr.bf16.mxu0 0
      %1476 = vmatpush1.bf16.msra.mxu0 0
      %1477 = vmatprep.mubr.bf16.mxu0 0
      %1478 = vmatmul.mubr.bf16.gmra.mrb[0].mxu0 %v1372
      %v1479 = vpop.f32.mrb[0].mxu0
      %v1480 = vadd.f32 %v1395, %v1479
      %v1481 = vpop.f32.mrb[0].mxu0
      %v1482 = vpop.f32.mrb[0].mxu0
      %v1483 = vadd.f32 %v1395, %v1482
      %v1484 = vpop.f32.mrb[0].mxu0
      %1485 = vmatprep.mubr.bf16.mxu0 0
      %1486 = vmatmul.mubr.bf16.gmra.mrb[0].mxu0 %v1373
      %v1487 = vpop.f32.mrb[0].mxu0
      %v1488 = vadd.f32 %v1395, %v1487
      %v1489 = vpop.f32.mrb[0].mxu0
      %v1490 = vpop.f32.mrb[0].mxu0
      %v1491 = vadd.f32 %v1395, %v1490
      %v1492 = vpop.f32.mrb[0].mxu0
      %1493 = vdwg.mxu0
      %1494 = vst [vmem:[%s429] sm:$0xff] %v1480
      %1495 = vst [vmem:[%s429 + $0x8] sm:$0xff] %v1483
      %1496 = vst [vmem:[%s429 + $0x10] sm:$0xff] %v1488
      %1497 = vst [vmem:[%s429 + $0x18] sm:$0xff] %v1491
      %v1500 = vrot.slane %v1370, 7
      %vm1501 = vcmask 1041409
      %v1502 = vsel %vm1501, %v1500, %v1368
      %1504 = vst [vmem:[%s423] sm:$0x3] %v1502
      %p1505 = scmp.lt.s32.totalorder %s23, 3
      %s1506 = scalar_select %p1505, %s23, 3
      %s1507 = smul.addr %s1506, 2
      %s1508 = scalar_lea.vmem %s10, %s1507
      %s1509 = smul.u32 2, %s23
      %p1510 = scmp.lt.s32.totalorder %s1509, 7
      %s1511 = scalar_select %p1510, %s1509, 7
      %s1512 = smul.addr %s1511, 2
      %s1513 = smul.addr %s1512, 8
      %s1514 = scalar_lea.vmem %s11, %s1513
      // Predicated region
      $region61: #{bi_encoder_forward.1} parent=59 // pred_check
        %p1515 = pneg %p261
      $region62: #{bi_encoder_forward.1} parent=59 // pred_check_branch
        %1517 = sbr.rel (%p1515) target = $region64
      $region63: #{bi_encoder_forward.1} parent=59 // pred_region
        _
      $region64: #{bi_encoder_forward.1} parent=59 // pred_fallthru
        _
      // Predicated region
      $region65: #{bi_encoder_forward.1} parent=59 // pred_check
        %p1518 = pneg %p287
      $region66: #{bi_encoder_forward.1} parent=59 // pred_check_branch
        %1520 = sbr.rel (%p1518) target = $region68
      $region67: #{bi_encoder_forward.1} parent=59 // pred_region
        %s1521 = smul.u32 2, %s23
      $region68: #{bi_encoder_forward.1} parent=59 // pred_fallthru
        _
    $region60: #{bi_encoder_forward.1} parent=5 // pred_fallthru
      _
    %p1522 = scmp.le.s32.totalorder 2, %s18
    // Predicated region
    $region69: #{bi_encoder_forward.1} parent=5 // pred_check
      %p1523 = pneg %p1522
    $region70: #{bi_encoder_forward.1} parent=5 // pred_check_branch
      %1525 = sbr.rel (%p1523) target = $region72
    $region71: #{bi_encoder_forward.1} parent=5 // pred_region
      %s1526 = ssub.s32 %s18, 2
      // Predicated region
      $region73: #{bi_encoder_forward.1} parent=71 // pred_check
        %p1527 = pneg %p267
      $region74: #{bi_encoder_forward.1} parent=71 // pred_check_branch
        %1529 = sbr.rel (%p1527) target = $region76
      $region75: #{bi_encoder_forward.1} parent=71 // pred_region
        %p1530 = scmp.lt.s32.totalorder %s24, 3
        %s1531 = scalar_select %p1530, %s24, 3
        %s1532 = smul.addr %s1531, 2
        %s1533 = scalar_lea.vmem %s10, %s1532
      $region76: #{bi_encoder_forward.1} parent=71 // pred_fallthru
        _
      // Predicated region
      $region77: #{bi_encoder_forward.1} parent=71 // pred_check
        %p1534 = pneg %p293
      $region78: #{bi_encoder_forward.1} parent=71 // pred_check_branch
        %1536 = sbr.rel (%p1534) target = $region80
      $region79: #{bi_encoder_forward.1} parent=71 // pred_region
        %s1537 = smul.u32 2, %s24
        %p1538 = scmp.lt.s32.totalorder %s1537, 7
        %s1539 = scalar_select %p1538, %s1537, 7
        %s1540 = smul.addr %s1539, 2
        %s1541 = smul.addr %s1540, 8
        %s1542 = scalar_lea.vmem %s11, %s1541
      $region80: #{bi_encoder_forward.1} parent=71 // pred_fallthru
        _
    $region72: #{bi_encoder_forward.1} parent=5 // pred_fallthru
      _
  $region6: #{bi_encoder_forward.1} parent=0 // loop_footer
    %s22 = sadd.s32 1, %s18
  $region7: #{bi_encoder_forward.1} parent=0 // loop_footer_branch
    %17 = sbr.rel target = $region3
  $region8: #{bi_encoder_forward.1} parent=0 // loop_exit
    _

</llo_original>
